<compile_context>
chip_gen: v7x
topology: tpu7x:2x2x1
jax: 0.10.0
libtpu: 0.0.40
codegen_flags: <defaults>
</compile_context>

<pallas_src>
import functools
import math

import jax
import jax.numpy as jnp
from jax.experimental import pallas as pl
from jax.experimental.pallas import tpu as pltpu

LN_EPS = 1e-5


def _round_up(n, m):
    return ((n + m - 1) // m) * m


def _layer_norm(x, w, b):
    # Matches torch.nn.LayerNorm (biased variance, eps inside rsqrt).
    mu = jnp.mean(x, axis=-1, keepdims=True)
    var = jnp.mean((x - mu) * (x - mu), axis=-1, keepdims=True)
    return (x - mu) * jax.lax.rsqrt(var + LN_EPS) * w + b


def _pad_lanes(x, lanes):
    """Pad the last dim up to `lanes` so the store is lane-dense (no vst.msk)."""
    pad = lanes - x.shape[-1]
    if pad == 0:
        return x
    zeros = jnp.zeros(x.shape[:-1] + (pad,), x.dtype)
    return jnp.concatenate([x, zeros], axis=-1)


def _vmem_limit_bytes():
    """Scoped-VMEM limit sized per generation (defaults are only 16/32 MiB)."""
    try:
        cap = int(pltpu.get_tpu_info().vmem_capacity_bytes)
    except Exception:
        cap = 64 * 1024 * 1024                    # conservative (v7x physical)
    return max(32 * 1024 * 1024, min(cap - (16 * 1024 * 1024), 100 * 1024 * 1024))


def encoder_layer_kernel(
    x_ref,                                   # (rows, D) f32  (block index (c, 0))
    ln1w_ref, ln1b_ref,                      # (1, 1, D) f32
    wqkv_ref, bqkv_ref,                      # (1, H, D, 3*hd) bf16 / (1, H, 1, 3*hd) f32
    wo_ref, bo_ref,                          # (1, D, D) bf16 / (1, 1, D) f32
    ln2w_ref, ln2b_ref,                      # (1, 1, D) f32
    w1_ref, b1_ref,                          # (1, D, M) bf16 / (1, 1, M) f32
    w2_ref, b2_ref,                          # (1, M, D) bf16 / (1, 1, D) f32
    *out_and_scratch,
    num_heads, head_dim, batch_per_chunk, seq_len, collect_attn,
):
    if collect_attn:
        xout_ref, attn_ref, x_scr = out_and_scratch
    else:
        xout_ref, x_scr = out_and_scratch
        attn_ref = None

    layer = pl.program_id(1)
    depth = pl.num_programs(1)

    Bc, L, H, hd = batch_per_chunk, seq_len, num_heads, head_dim
    N = Bc * L
    scale = 1.0 / math.sqrt(hd)

    # First layer of this chunk: load the activation into the VMEM carry.
    @pl.when(layer == 0)
    def _():
        x_scr[...] = x_ref[...].astype(jnp.float32)

    x = x_scr[...]                                            # (N, D) f32

    # ---- PreNorm + multi-head self-attention ------------------------------
    xn = _layer_norm(x, ln1w_ref[0], ln1b_ref[0])
    xnb = xn.astype(jnp.bfloat16)

    head_outs = []
    if collect_attn:
        attn_sum = jnp.zeros((Bc, L, L), jnp.float32)

    # Heads: short static loop; all weight indexing is on leading dims.
    for h in range(H):
        # One fused (N, D) @ (D, 3*hd) projection per head (q|k|v on lanes).
        qkv = jnp.dot(xnb, wqkv_ref[0, h],
                      preferred_element_type=jnp.float32) + bqkv_ref[0, h]
        q = qkv[:, :hd] * scale                    # 1/sqrt(hd) applied in f32
        k = qkv[:, hd:2 * hd]
        v = qkv[:, 2 * hd:]

        # (N, hd) -> (Bc, L, hd): leading-dim split only (free, no relayout).
        qb = q.reshape(Bc, L, hd).astype(jnp.bfloat16)
        kb = k.reshape(Bc, L, hd).astype(jnp.bfloat16)
        vb = v.reshape(Bc, L, hd).astype(jnp.bfloat16)

        # TODO(synk): flash-style query-row tiling here when L is large.
        s = jnp.einsum('bqe,bke->bqk', qb, kb,
                       preferred_element_type=jnp.float32)      # (Bc, L, L)
        s = s - jnp.max(s, axis=-1, keepdims=True)
        p = jnp.exp(s)
        p = p * pl.reciprocal(jnp.sum(p, axis=-1, keepdims=True))  # exact

        if collect_attn:
            attn_sum = attn_sum + p

        ob = jnp.einsum('bqk,bke->bqe', p.astype(jnp.bfloat16), vb,
                        preferred_element_type=jnp.float32)     # (Bc, L, hd)
        head_outs.append(ob.reshape(N, hd).astype(jnp.bfloat16))

    # Concatenate head outputs on lanes -> single (N, D) @ (D, D) out-proj
    # (full-K MXU matmul; no per-head VPU accumulation).
    o_cat = jnp.concatenate(head_outs, axis=-1) if H > 1 else head_outs[0]
    x = x + jnp.dot(o_cat, wo_ref[0],
                    preferred_element_type=jnp.float32) + bo_ref[0]

    if collect_attn:
        # Head-averaged weights, written bf16 / lane-dense (cropped in wrapper).
        attn = (attn_sum * (1.0 / H)).astype(attn_ref.dtype)
        attn_ref[0] = _pad_lanes(attn, attn_ref.shape[-1])

    # ---- PreNorm + FeedForward ---------------------------------------------
    xn2 = _layer_norm(x, ln2w_ref[0], ln2b_ref[0])
    h1 = jnp.dot(xn2.astype(jnp.bfloat16), w1_ref[0],
                 preferred_element_type=jnp.float32) + b1_ref[0]
    # tanh-approx GELU: tanh runs on the EUP slot (erf = long VPU polynomial).
    h1 = 0.5 * h1 * (1.0 + jnp.tanh(0.7978845608028654 *
                                    (h1 + 0.044715 * h1 * h1 * h1)))
    x = x + jnp.dot(h1.astype(jnp.bfloat16), w2_ref[0],
                    preferred_element_type=jnp.float32) + b2_ref[0]

    # Carry the activation to the next layer; final layer writes the output.
    x_scr[...] = x

    @pl.when(layer == depth - 1)
    def _():
        xout_ref[...] = _pad_lanes(x, xout_ref.shape[-1])


def prepare_params(layer_params, num_heads):
    """One-time transform of PyTorch-layout params into the kernel layout:
    per-head fused (D, 3*hd) qkv weights on leading dims, bf16 matmul weights,
    everything stacked over a leading depth axis (indexed by the depth grid)."""
    D = layer_params[0]["w_qkv"].shape[0]
    H = num_heads
    hd = D // H

    def split_heads_w(w):   # (D, D) cols -> (H, D, hd)
        return jnp.transpose(w.reshape(D, H, hd), (1, 0, 2))

    def split_heads_b(b):   # (1, D) -> (H, 1, hd)
        return jnp.transpose(b.reshape(1, H, hd), (1, 0, 2))

    def per_layer(p):
        wq = split_heads_w(p["w_qkv"][:, :D])
        wk = split_heads_w(p["w_qkv"][:, D:2 * D])
        wv = split_heads_w(p["w_qkv"][:, 2 * D:])
        bq = split_heads_b(p["b_qkv"][:, :D])
        bk = split_heads_b(p["b_qkv"][:, D:2 * D])
        bv = split_heads_b(p["b_qkv"][:, 2 * D:])
        return dict(
            ln1_w=p["ln1_w"].astype(jnp.float32),
            ln1_b=p["ln1_b"].astype(jnp.float32),
            w_qkv=jnp.concatenate([wq, wk, wv], axis=-1).astype(jnp.bfloat16),
            b_qkv=jnp.concatenate([bq, bk, bv], axis=-1).astype(jnp.float32),
            w_o=p["w_o"].astype(jnp.bfloat16),
            b_o=p["b_o"].astype(jnp.float32),
            ln2_w=p["ln2_w"].astype(jnp.float32),
            ln2_b=p["ln2_b"].astype(jnp.float32),
            w1=p["w1"].astype(jnp.bfloat16),
            b1=p["b1"].astype(jnp.float32),
            w2=p["w2"].astype(jnp.bfloat16),
            b2=p["b2"].astype(jnp.float32),
        )

    per = [per_layer(p) for p in layer_params]
    return {k: jnp.stack([d[k] for d in per], axis=0) for k in per[0]}


def transformer_encoder_forward(x, layer_params, num_heads, *,
                                num_batch_chunks=1, collect_attn=True):
    """Mirrors TransformerEncoder.forward: returns (x, [attn_weight per layer]).

    Grid = (batch_chunks, depth): depth is a pipelined "arbitrary" axis (layer
    l+1 weight DMAs overlap layer l compute); batch chunks are "parallel"."""
    B, L, D = x.shape
    depth = len(layer_params)
    H = num_heads
    hd = D // H
    assert D % H == 0
    assert B % num_batch_chunks == 0
    Bc = B // num_batch_chunks
    rows = Bc * L
    if num_batch_chunks > 1:
        assert rows % 8 == 0, "per-chunk row count must be sublane aligned"

    M = layer_params[0]["w1"].shape[1]
    Dp = _round_up(D, 128)      # lane-dense output widths (cropped after call)
    Lp = _round_up(L, 128)

    p = prepare_params(layer_params, num_heads)
    x_flat = x.reshape(B * L, D).astype(jnp.float32)

    def wspec(shape):
        # Per-layer weight: block is one depth slice, indexed by the depth axis.
        n = len(shape) - 1
        return pl.BlockSpec((1,) + tuple(shape[1:]),
                            lambda c, l, _n=n: (l,) + (0,) * _n)

    in_specs = [
        pl.BlockSpec((rows, D), lambda c, l: (c, 0)),              # x (rows)
        wspec((depth, 1, D)), wspec((depth, 1, D)),                # ln1 w/b
        wspec((depth, H, D, 3 * hd)), wspec((depth, H, 1, 3 * hd)),  # qkv w/b
        wspec((depth, D, D)), wspec((depth, 1, D)),                # wo, bo
        wspec((depth, 1, D)), wspec((depth, 1, D)),                # ln2 w/b
        wspec((depth, D, M)), wspec((depth, 1, M)),                # w1, b1
        wspec((depth, M, D)), wspec((depth, 1, D)),                # w2, b2
    ]
    out_specs = [pl.BlockSpec((rows, Dp), lambda c, l: (c, 0))]
    out_shape = [jax.ShapeDtypeStruct((B * L, Dp), jnp.float32)]
    if collect_attn:
        out_specs.append(pl.BlockSpec((1, Bc, L, Lp), lambda c, l: (l, c, 0, 0)))
        out_shape.append(jax.ShapeDtypeStruct((depth, B, L, Lp), jnp.bfloat16))

    kernel = functools.partial(
        encoder_layer_kernel, num_heads=H, head_dim=hd,
        batch_per_chunk=Bc, seq_len=L, collect_attn=collect_attn)

    outs = pl.pallas_call(
        kernel,
        grid_spec=pltpu.PrefetchScalarGridSpec(
            num_scalar_prefetch=0,
            grid=(num_batch_chunks, depth),
            in_specs=in_specs,
            out_specs=tuple(out_specs),
            scratch_shapes=[pltpu.VMEM((rows, D), jnp.float32)],   # layer carry
        ),
        out_shape=tuple(out_shape),
        compiler_params=pltpu.CompilerParams(
            dimension_semantics=("parallel", "arbitrary"),
            vmem_limit_bytes=_vmem_limit_bytes(),
        ),
    )(
        x_flat,
        p["ln1_w"], p["ln1_b"],
        p["w_qkv"], p["b_qkv"],
        p["w_o"], p["b_o"],
        p["ln2_w"], p["ln2_b"],
        p["w1"], p["b1"],
        p["w2"], p["b2"],
    )

    x_out = outs[0][:, :D].reshape(B, L, D)
    if not collect_attn:
        return x_out, []
    attn = outs[1][..., :L].astype(jnp.float32)          # (depth, B, L, L)
    l_attn = [attn[i] for i in range(depth)]
    return x_out, l_attn


def init_layer_params(key, dim, mlp_dim):
    """PyTorch-like parameter layout (fused in_proj, right-multiply weights)."""
    ks = jax.random.split(key, 6)
    s = 0.02
    return {
        "ln1_w": jnp.ones((1, dim), jnp.float32),
        "ln1_b": jnp.zeros((1, dim), jnp.float32),
        "w_qkv": (s * jax.random.normal(ks[0], (dim, 3 * dim))).astype(jnp.float32),
        "b_qkv": jnp.zeros((1, 3 * dim), jnp.float32),
        "w_o": (s * jax.random.normal(ks[1], (dim, dim))).astype(jnp.float32),
        "b_o": jnp.zeros((1, dim), jnp.float32),
        "ln2_w": jnp.ones((1, dim), jnp.float32),
        "ln2_b": jnp.zeros((1, dim), jnp.float32),
        "w1": (s * jax.random.normal(ks[2], (dim, mlp_dim))).astype(jnp.float32),
        "b1": (s * jax.random.normal(ks[3], (1, mlp_dim))).astype(jnp.float32),
        "w2": (s * jax.random.normal(ks[4], (mlp_dim, dim))).astype(jnp.float32),
        "b2": (s * jax.random.normal(ks[5], (1, dim))).astype(jnp.float32),
    }


def _reference_forward(x, layer_params, num_heads):
    """Pure-JAX f32 reference mirroring the PyTorch module exactly (erf GELU)."""
    B, L, D = x.shape
    H = num_heads
    hd = D // H
    l_attn = []
    for p in layer_params:
        xn = _layer_norm(x, p["ln1_w"], p["ln1_b"])
        qkv = xn @ p["w_qkv"] + p["b_qkv"]
        q, k, v = qkv[..., :D], qkv[..., D:2 * D], qkv[..., 2 * D:]

        def heads(t):
            return t.reshape(B, L, H, hd).transpose(0, 2, 1, 3)

        qh, kh, vh = heads(q), heads(k), heads(v)
        s = jnp.einsum('bhqe,bhke->bhqk', qh, kh) / math.sqrt(hd)
        pa = jax.nn.softmax(s, axis=-1)
        l_attn.append(jnp.mean(pa, axis=1))
        o = jnp.einsum('bhqk,bhke->bhqe', pa, vh)
        o = o.transpose(0, 2, 1, 3).reshape(B, L, D)
        x = x + (o @ p["w_o"] + p["b_o"])
        xn2 = _layer_norm(x, p["ln2_w"], p["ln2_b"])
        h1 = xn2 @ p["w1"] + p["b1"]
        h1 = 0.5 * h1 * (1.0 + jax.lax.erf(h1 * (1.0 / math.sqrt(2.0))))
        x = x + (h1 @ p["w2"] + p["b2"])
    return x, l_attn


if __name__ == "__main__":
    # Small config consistent with the module: dim=32, depth=2, heads=4, mlp_dim=64
    B, L = 2, 8
    DIM, DEPTH, HEADS, MLP_DIM = 32, 2, 4, 64

    key = jax.random.PRNGKey(0)
    kx, kp = jax.random.split(key)
    x = jax.random.normal(kx, (B, L, DIM), dtype=jnp.float32)

    layer_keys = jax.random.split(kp, DEPTH)
    layer_params = [init_layer_params(k, DIM, MLP_DIM) for k in layer_keys]

    out, l_attn = transformer_encoder_forward(x, layer_params, HEADS)
    out = jax.block_until_ready(out)
    l_attn = [jax.block_until_ready(a) for a in l_attn]

    assert out.shape == (B, L, DIM)
    assert len(l_attn) == DEPTH and all(a.shape == (B, L, L) for a in l_attn)
    assert bool(jnp.all(jnp.isfinite(out)))
    # rows of the head-averaged attention sum to ~1 (bf16 storage + matmuls)
    assert bool(jnp.allclose(jnp.sum(l_attn[0], axis=-1), 1.0, atol=2e-2))

    # compare against a pure-JAX f32 reference of the module
    ref_out, ref_attn = _reference_forward(x, layer_params, HEADS)
    assert bool(jnp.allclose(out, ref_out, rtol=5e-2, atol=5e-2))
    assert bool(jnp.allclose(l_attn[0], ref_attn[0], rtol=5e-2, atol=5e-2))
    assert bool(jnp.allclose(l_attn[-1], ref_attn[-1], rtol=5e-2, atol=5e-2))

    print("KERNEL_OK")
</pallas_src>

<mosaic_0001>
module attributes {stable_mosaic.version = 11 : i64} {
  func.func @encoder_layer_kernel(%arg0: i32, %arg1: i32, %arg2: memref<16x32xf32, #tpu.memory_space<vmem>>, %arg3: memref<1x1x32xf32, #tpu.memory_space<vmem>>, %arg4: memref<1x1x32xf32, #tpu.memory_space<vmem>>, %arg5: memref<1x4x32x24xbf16, #tpu.memory_space<vmem>>, %arg6: memref<1x4x1x24xf32, #tpu.memory_space<vmem>>, %arg7: memref<1x32x32xbf16, #tpu.memory_space<vmem>>, %arg8: memref<1x1x32xf32, #tpu.memory_space<vmem>>, %arg9: memref<1x1x32xf32, #tpu.memory_space<vmem>>, %arg10: memref<1x1x32xf32, #tpu.memory_space<vmem>>, %arg11: memref<1x32x64xbf16, #tpu.memory_space<vmem>>, %arg12: memref<1x1x64xf32, #tpu.memory_space<vmem>>, %arg13: memref<1x64x32xbf16, #tpu.memory_space<vmem>>, %arg14: memref<1x1x32xf32, #tpu.memory_space<vmem>>, %arg15: memref<16x128xf32, #tpu.memory_space<vmem>>, %arg16: memref<1x2x8x128xbf16, #tpu.memory_space<vmem>>, %arg17: memref<16x32xf32, #tpu.memory_space<vmem>>) attributes {dimension_semantics = [#tpu.dimension_semantics<parallel>, #tpu.dimension_semantics<arbitrary>], iteration_bounds = array<i64: 1, 2>, scalar_prefetch = 0 : i64, scratch_operands = 1 : i64, tpu.core_type = #tpu.core_type<tc>, window_params = [{transform_indices = @transform_0, window_bounds = array<i64: 16, 32>}, {transform_indices = @transform_1, window_bounds = array<i64: 1, 1, 32>}, {transform_indices = @transform_2, window_bounds = array<i64: 1, 1, 32>}, {transform_indices = @transform_3, window_bounds = array<i64: 1, 4, 32, 24>}, {transform_indices = @transform_4, window_bounds = array<i64: 1, 4, 1, 24>}, {transform_indices = @transform_5, window_bounds = array<i64: 1, 32, 32>}, {transform_indices = @transform_6, window_bounds = array<i64: 1, 1, 32>}, {transform_indices = @transform_7, window_bounds = array<i64: 1, 1, 32>}, {transform_indices = @transform_8, window_bounds = array<i64: 1, 1, 32>}, {transform_indices = @transform_9, window_bounds = array<i64: 1, 32, 64>}, {transform_indices = @transform_10, window_bounds = array<i64: 1, 1, 64>}, {transform_indices = @transform_11, window_bounds = array<i64: 1, 64, 32>}, {transform_indices = @transform_12, window_bounds = array<i64: 1, 1, 32>}, {transform_indices = @transform_13, window_bounds = array<i64: 16, 128>}, {transform_indices = @transform_14, window_bounds = array<i64: 1, 2, 8, 128>}]} {
    %c0_i32 = arith.constant 0 : i32
    %0 = arith.cmpi eq, %arg1, %c0_i32 : i32
    %1 = arith.extui %0 : i1 to i32
    %c0_i32_0 = arith.constant 0 : i32
    %2 = arith.cmpi ne, %1, %c0_i32_0 : i32
    scf.if %2 {
      %c0_111 = arith.constant 0 : index
      %c0_112 = arith.constant 0 : index
      %249 = vector.load %arg2[%c0_111, %c0_112] : memref<16x32xf32, #tpu.memory_space<vmem>>, vector<16x32xf32>
      %c0_113 = arith.constant 0 : index
      %c0_114 = arith.constant 0 : index
      %250 = vector.load %arg17[%c0_113, %c0_114] : memref<16x32xf32, #tpu.memory_space<vmem>>, vector<16x32xf32>
      tpu.vector_store %arg17[%c0_113, %c0_114], %249 {strides = array<i32>} : memref<16x32xf32, #tpu.memory_space<vmem>>, vector<16x32xf32>,
    } else {
    }
    %c0 = arith.constant 0 : index
    %c0_1 = arith.constant 0 : index
    %3 = vector.load %arg17[%c0, %c0_1] : memref<16x32xf32, #tpu.memory_space<vmem>>, vector<16x32xf32>
    %c0_2 = arith.constant 0 : index
    %c0_3 = arith.constant 0 : index
    %c0_4 = arith.constant 0 : index
    %4 = vector.load %arg3[%c0_2, %c0_3, %c0_4] : memref<1x1x32xf32, #tpu.memory_space<vmem>>, vector<1x1x32xf32>
    %5 = vector.shape_cast %4 : vector<1x1x32xf32> to vector<1x32xf32>
    %c0_5 = arith.constant 0 : index
    %c0_6 = arith.constant 0 : index
    %c0_7 = arith.constant 0 : index
    %6 = vector.load %arg4[%c0_5, %c0_6, %c0_7] : memref<1x1x32xf32, #tpu.memory_space<vmem>>, vector<1x1x32xf32>
    %7 = vector.shape_cast %6 : vector<1x1x32xf32> to vector<1x32xf32>
    %cst = arith.constant dense<0.000000e+00> : vector<16xf32>
    %8 = vector.multi_reduction <add>, %3, %cst [1] : vector<16x32xf32> to vector<16xf32>
    %9 = vector.shape_cast %8 : vector<16xf32> to vector<16x1xf32>
    %cst_8 = arith.constant 3.200000e+01 : f32
    %10 = vector.broadcast %cst_8 : f32 to vector<16x1xf32>
    %11 = arith.divf %9, %10 : vector<16x1xf32>
    %12 = vector.broadcast %11 : vector<16x1xf32> to vector<16x32xf32>
    %13 = arith.subf %3, %12 : vector<16x32xf32>
    %14 = vector.broadcast %11 : vector<16x1xf32> to vector<16x32xf32>
    %15 = arith.subf %3, %14 : vector<16x32xf32>
    %16 = arith.mulf %13, %15 : vector<16x32xf32>
    %cst_9 = arith.constant dense<0.000000e+00> : vector<16xf32>
    %17 = vector.multi_reduction <add>, %16, %cst_9 [1] : vector<16x32xf32> to vector<16xf32>
    %18 = vector.shape_cast %17 : vector<16xf32> to vector<16x1xf32>
    %cst_10 = arith.constant 3.200000e+01 : f32
    %19 = vector.broadcast %cst_10 : f32 to vector<16x1xf32>
    %20 = arith.divf %18, %19 : vector<16x1xf32>
    %21 = vector.broadcast %11 : vector<16x1xf32> to vector<16x32xf32>
    %22 = arith.subf %3, %21 : vector<16x32xf32>
    %cst_11 = arith.constant 9.99999974E-6 : f32
    %23 = vector.broadcast %cst_11 : f32 to vector<16x1xf32>
    %24 = arith.addf %20, %23 : vector<16x1xf32>
    %25 = math.rsqrt %24 : vector<16x1xf32>
    %26 = vector.broadcast %25 : vector<16x1xf32> to vector<16x32xf32>
    %27 = arith.mulf %22, %26 : vector<16x32xf32>
    %28 = vector.broadcast %5 : vector<1x32xf32> to vector<16x32xf32>
    %29 = arith.mulf %27, %28 : vector<16x32xf32>
    %30 = vector.broadcast %7 : vector<1x32xf32> to vector<16x32xf32>
    %31 = arith.addf %29, %30 : vector<16x32xf32>
    %32 = arith.truncf %31 : vector<16x32xf32> to vector<16x32xbf16>
    %cst_12 = arith.constant 0.000000e+00 : f32
    %33 = vector.broadcast %cst_12 : f32 to vector<2x8x8xf32>
    %c0_13 = arith.constant 0 : index
    %c0_14 = arith.constant 0 : index
    %c0_15 = arith.constant 0 : index
    %c0_16 = arith.constant 0 : index
    %34 = vector.load %arg5[%c0_13, %c0_14, %c0_15, %c0_16] : memref<1x4x32x24xbf16, #tpu.memory_space<vmem>>, vector<1x1x32x24xbf16>
    %35 = vector.shape_cast %34 : vector<1x1x32x24xbf16> to vector<32x24xbf16>
    %cst_17 = arith.constant dense<0.000000e+00> : vector<16x24xf32>
    %36 = tpu.matmul %32, %35, %cst_17 {dimension_numbers = #tpu.dot_dimension_numbers<[1], [0], [0], [1], [0, 0, 1, 1], [], []>} : vector<16x32xbf16>, vector<32x24xbf16>, vector<16x24xf32> -> vector<16x24xf32>
    %c0_18 = arith.constant 0 : index
    %c0_19 = arith.constant 0 : index
    %c0_20 = arith.constant 0 : index
    %c0_21 = arith.constant 0 : index
    %37 = vector.load %arg6[%c0_18, %c0_19, %c0_20, %c0_21] : memref<1x4x1x24xf32, #tpu.memory_space<vmem>>, vector<1x1x1x24xf32>
    %38 = vector.shape_cast %37 : vector<1x1x1x24xf32> to vector<1x24xf32>
    %39 = vector.broadcast %38 : vector<1x24xf32> to vector<16x24xf32>
    %40 = arith.addf %36, %39 : vector<16x24xf32>
    %41 = vector.extract_strided_slice %40 {offsets = [0, 0], sizes = [16, 8], strides = [1, 1]} : vector<16x24xf32> to vector<16x8xf32>
    %cst_22 = arith.constant 0.353553385 : f32
    %42 = vector.broadcast %cst_22 : f32 to vector<16x8xf32>
    %43 = arith.mulf %41, %42 : vector<16x8xf32>
    %44 = vector.extract_strided_slice %40 {offsets = [0, 8], sizes = [16, 8], strides = [1, 1]} : vector<16x24xf32> to vector<16x8xf32>
    %45 = vector.extract_strided_slice %40 {offsets = [0, 16], sizes = [16, 8], strides = [1, 1]} : vector<16x24xf32> to vector<16x8xf32>
    %46 = vector.shape_cast %43 : vector<16x8xf32> to vector<2x8x8xf32>
    %47 = arith.truncf %46 : vector<2x8x8xf32> to vector<2x8x8xbf16>
    %48 = vector.shape_cast %44 : vector<16x8xf32> to vector<2x8x8xf32>
    %49 = arith.truncf %48 : vector<2x8x8xf32> to vector<2x8x8xbf16>
    %50 = vector.shape_cast %45 : vector<16x8xf32> to vector<2x8x8xf32>
    %51 = arith.truncf %50 : vector<2x8x8xf32> to vector<2x8x8xbf16>
    "tpu.trace_start"() <{level = 10 : i32, message = "bqe,bke->bqk"}> : () -> ()
    %cst_23 = arith.constant dense<0.000000e+00> : vector<2x8x8xf32>
    %52 = tpu.matmul %47, %49, %cst_23 {dimension_numbers = #tpu.dot_dimension_numbers<[2], [2], [1], [1], [0, 0, 0, 1, 1, 1], [0], [0]>} : vector<2x8x8xbf16>, vector<2x8x8xbf16>, vector<2x8x8xf32> -> vector<2x8x8xf32>
    "tpu.trace_stop"() : () -> ()
    %cst_24 = arith.constant dense<0xFF800000> : vector<2x8xf32>
    %53 = vector.multi_reduction <maximumf>, %52, %cst_24 [2] : vector<2x8x8xf32> to vector<2x8xf32>
    %54 = vector.shape_cast %53 : vector<2x8xf32> to vector<2x8x1xf32>
    %55 = vector.broadcast %54 : vector<2x8x1xf32> to vector<2x8x8xf32>
    %56 = arith.subf %52, %55 : vector<2x8x8xf32>
    %57 = math.exp %56 : vector<2x8x8xf32>
    %cst_25 = arith.constant dense<0.000000e+00> : vector<2x8xf32>
    %58 = vector.multi_reduction <add>, %57, %cst_25 [2] : vector<2x8x8xf32> to vector<2x8xf32>
    %59 = vector.shape_cast %58 : vector<2x8xf32> to vector<2x8x1xf32>
    %60 = tpu.reciprocal %59 : vector<2x8x1xf32> -> vector<2x8x1xf32>
    %61 = vector.broadcast %60 : vector<2x8x1xf32> to vector<2x8x8xf32>
    %62 = arith.mulf %57, %61 : vector<2x8x8xf32>
    %63 = arith.addf %33, %62 : vector<2x8x8xf32>
    %64 = arith.truncf %62 : vector<2x8x8xf32> to vector<2x8x8xbf16>
    "tpu.trace_start"() <{level = 10 : i32, message = "bqk,bke->bqe"}> : () -> ()
    %cst_26 = arith.constant dense<0.000000e+00> : vector<2x8x8xf32>
    %65 = tpu.matmul %64, %51, %cst_26 {dimension_numbers = #tpu.dot_dimension_numbers<[2], [1], [1], [2], [0, 0, 0, 1, 1, 2], [0], [0]>} : vector<2x8x8xbf16>, vector<2x8x8xbf16>, vector<2x8x8xf32> -> vector<2x8x8xf32>
    "tpu.trace_stop"() : () -> ()
    %66 = vector.shape_cast %65 : vector<2x8x8xf32> to vector<16x8xf32>
    %67 = arith.truncf %66 : vector<16x8xf32> to vector<16x8xbf16>
    %c0_27 = arith.constant 0 : index
    %c1 = arith.constant 1 : index
    %c0_28 = arith.constant 0 : index
    %c0_29 = arith.constant 0 : index
    %68 = vector.load %arg5[%c0_27, %c1, %c0_28, %c0_29] : memref<1x4x32x24xbf16, #tpu.memory_space<vmem>>, vector<1x1x32x24xbf16>
    %69 = vector.shape_cast %68 : vector<1x1x32x24xbf16> to vector<32x24xbf16>
    %cst_30 = arith.constant dense<0.000000e+00> : vector<16x24xf32>
    %70 = tpu.matmul %32, %69, %cst_30 {dimension_numbers = #tpu.dot_dimension_numbers<[1], [0], [0], [1], [0, 0, 1, 1], [], []>} : vector<16x32xbf16>, vector<32x24xbf16>, vector<16x24xf32> -> vector<16x24xf32>
    %c0_31 = arith.constant 0 : index
    %c1_32 = arith.constant 1 : index
    %c0_33 = arith.constant 0 : index
    %c0_34 = arith.constant 0 : index
    %71 = vector.load %arg6[%c0_31, %c1_32, %c0_33, %c0_34] : memref<1x4x1x24xf32, #tpu.memory_space<vmem>>, vector<1x1x1x24xf32>
    %72 = vector.shape_cast %71 : vector<1x1x1x24xf32> to vector<1x24xf32>
    %73 = vector.broadcast %72 : vector<1x24xf32> to vector<16x24xf32>
    %74 = arith.addf %70, %73 : vector<16x24xf32>
    %75 = vector.extract_strided_slice %74 {offsets = [0, 0], sizes = [16, 8], strides = [1, 1]} : vector<16x24xf32> to vector<16x8xf32>
    %cst_35 = arith.constant 0.353553385 : f32
    %76 = vector.broadcast %cst_35 : f32 to vector<16x8xf32>
    %77 = arith.mulf %75, %76 : vector<16x8xf32>
    %78 = vector.extract_strided_slice %74 {offsets = [0, 8], sizes = [16, 8], strides = [1, 1]} : vector<16x24xf32> to vector<16x8xf32>
    %79 = vector.extract_strided_slice %74 {offsets = [0, 16], sizes = [16, 8], strides = [1, 1]} : vector<16x24xf32> to vector<16x8xf32>
    %80 = vector.shape_cast %77 : vector<16x8xf32> to vector<2x8x8xf32>
    %81 = arith.truncf %80 : vector<2x8x8xf32> to vector<2x8x8xbf16>
    %82 = vector.shape_cast %78 : vector<16x8xf32> to vector<2x8x8xf32>
    %83 = arith.truncf %82 : vector<2x8x8xf32> to vector<2x8x8xbf16>
    %84 = vector.shape_cast %79 : vector<16x8xf32> to vector<2x8x8xf32>
    %85 = arith.truncf %84 : vector<2x8x8xf32> to vector<2x8x8xbf16>
    "tpu.trace_start"() <{level = 10 : i32, message = "bqe,bke->bqk"}> : () -> ()
    %cst_36 = arith.constant dense<0.000000e+00> : vector<2x8x8xf32>
    %86 = tpu.matmul %81, %83, %cst_36 {dimension_numbers = #tpu.dot_dimension_numbers<[2], [2], [1], [1], [0, 0, 0, 1, 1, 1], [0], [0]>} : vector<2x8x8xbf16>, vector<2x8x8xbf16>, vector<2x8x8xf32> -> vector<2x8x8xf32>
    "tpu.trace_stop"() : () -> ()
    %cst_37 = arith.constant dense<0xFF800000> : vector<2x8xf32>
    %87 = vector.multi_reduction <maximumf>, %86, %cst_37 [2] : vector<2x8x8xf32> to vector<2x8xf32>
    %88 = vector.shape_cast %87 : vector<2x8xf32> to vector<2x8x1xf32>
    %89 = vector.broadcast %88 : vector<2x8x1xf32> to vector<2x8x8xf32>
    %90 = arith.subf %86, %89 : vector<2x8x8xf32>
    %91 = math.exp %90 : vector<2x8x8xf32>
    %cst_38 = arith.constant dense<0.000000e+00> : vector<2x8xf32>
    %92 = vector.multi_reduction <add>, %91, %cst_38 [2] : vector<2x8x8xf32> to vector<2x8xf32>
    %93 = vector.shape_cast %92 : vector<2x8xf32> to vector<2x8x1xf32>
    %94 = tpu.reciprocal %93 : vector<2x8x1xf32> -> vector<2x8x1xf32>
    %95 = vector.broadcast %94 : vector<2x8x1xf32> to vector<2x8x8xf32>
    %96 = arith.mulf %91, %95 : vector<2x8x8xf32>
    %97 = arith.addf %63, %96 : vector<2x8x8xf32>
    %98 = arith.truncf %96 : vector<2x8x8xf32> to vector<2x8x8xbf16>
    "tpu.trace_start"() <{level = 10 : i32, message = "bqk,bke->bqe"}> : () -> ()
    %cst_39 = arith.constant dense<0.000000e+00> : vector<2x8x8xf32>
    %99 = tpu.matmul %98, %85, %cst_39 {dimension_numbers = #tpu.dot_dimension_numbers<[2], [1], [1], [2], [0, 0, 0, 1, 1, 2], [0], [0]>} : vector<2x8x8xbf16>, vector<2x8x8xbf16>, vector<2x8x8xf32> -> vector<2x8x8xf32>
    "tpu.trace_stop"() : () -> ()
    %100 = vector.shape_cast %99 : vector<2x8x8xf32> to vector<16x8xf32>
    %101 = arith.truncf %100 : vector<16x8xf32> to vector<16x8xbf16>
    %c0_40 = arith.constant 0 : index
    %c2 = arith.constant 2 : index
    %c0_41 = arith.constant 0 : index
    %c0_42 = arith.constant 0 : index
    %102 = vector.load %arg5[%c0_40, %c2, %c0_41, %c0_42] : memref<1x4x32x24xbf16, #tpu.memory_space<vmem>>, vector<1x1x32x24xbf16>
    %103 = vector.shape_cast %102 : vector<1x1x32x24xbf16> to vector<32x24xbf16>
    %cst_43 = arith.constant dense<0.000000e+00> : vector<16x24xf32>
    %104 = tpu.matmul %32, %103, %cst_43 {dimension_numbers = #tpu.dot_dimension_numbers<[1], [0], [0], [1], [0, 0, 1, 1], [], []>} : vector<16x32xbf16>, vector<32x24xbf16>, vector<16x24xf32> -> vector<16x24xf32>
    %c0_44 = arith.constant 0 : index
    %c2_45 = arith.constant 2 : index
    %c0_46 = arith.constant 0 : index
    %c0_47 = arith.constant 0 : index
    %105 = vector.load %arg6[%c0_44, %c2_45, %c0_46, %c0_47] : memref<1x4x1x24xf32, #tpu.memory_space<vmem>>, vector<1x1x1x24xf32>
    %106 = vector.shape_cast %105 : vector<1x1x1x24xf32> to vector<1x24xf32>
    %107 = vector.broadcast %106 : vector<1x24xf32> to vector<16x24xf32>
    %108 = arith.addf %104, %107 : vector<16x24xf32>
    %109 = vector.extract_strided_slice %108 {offsets = [0, 0], sizes = [16, 8], strides = [1, 1]} : vector<16x24xf32> to vector<16x8xf32>
    %cst_48 = arith.constant 0.353553385 : f32
    %110 = vector.broadcast %cst_48 : f32 to vector<16x8xf32>
    %111 = arith.mulf %109, %110 : vector<16x8xf32>
    %112 = vector.extract_strided_slice %108 {offsets = [0, 8], sizes = [16, 8], strides = [1, 1]} : vector<16x24xf32> to vector<16x8xf32>
    %113 = vector.extract_strided_slice %108 {offsets = [0, 16], sizes = [16, 8], strides = [1, 1]} : vector<16x24xf32> to vector<16x8xf32>
    %114 = vector.shape_cast %111 : vector<16x8xf32> to vector<2x8x8xf32>
    %115 = arith.truncf %114 : vector<2x8x8xf32> to vector<2x8x8xbf16>
    %116 = vector.shape_cast %112 : vector<16x8xf32> to vector<2x8x8xf32>
    %117 = arith.truncf %116 : vector<2x8x8xf32> to vector<2x8x8xbf16>
    %118 = vector.shape_cast %113 : vector<16x8xf32> to vector<2x8x8xf32>
    %119 = arith.truncf %118 : vector<2x8x8xf32> to vector<2x8x8xbf16>
    "tpu.trace_start"() <{level = 10 : i32, message = "bqe,bke->bqk"}> : () -> ()
    %cst_49 = arith.constant dense<0.000000e+00> : vector<2x8x8xf32>
    %120 = tpu.matmul %115, %117, %cst_49 {dimension_numbers = #tpu.dot_dimension_numbers<[2], [2], [1], [1], [0, 0, 0, 1, 1, 1], [0], [0]>} : vector<2x8x8xbf16>, vector<2x8x8xbf16>, vector<2x8x8xf32> -> vector<2x8x8xf32>
    "tpu.trace_stop"() : () -> ()
    %cst_50 = arith.constant dense<0xFF800000> : vector<2x8xf32>
    %121 = vector.multi_reduction <maximumf>, %120, %cst_50 [2] : vector<2x8x8xf32> to vector<2x8xf32>
    %122 = vector.shape_cast %121 : vector<2x8xf32> to vector<2x8x1xf32>
    %123 = vector.broadcast %122 : vector<2x8x1xf32> to vector<2x8x8xf32>
    %124 = arith.subf %120, %123 : vector<2x8x8xf32>
    %125 = math.exp %124 : vector<2x8x8xf32>
    %cst_51 = arith.constant dense<0.000000e+00> : vector<2x8xf32>
    %126 = vector.multi_reduction <add>, %125, %cst_51 [2] : vector<2x8x8xf32> to vector<2x8xf32>
    %127 = vector.shape_cast %126 : vector<2x8xf32> to vector<2x8x1xf32>
    %128 = tpu.reciprocal %127 : vector<2x8x1xf32> -> vector<2x8x1xf32>
    %129 = vector.broadcast %128 : vector<2x8x1xf32> to vector<2x8x8xf32>
    %130 = arith.mulf %125, %129 : vector<2x8x8xf32>
    %131 = arith.addf %97, %130 : vector<2x8x8xf32>
    %132 = arith.truncf %130 : vector<2x8x8xf32> to vector<2x8x8xbf16>
    "tpu.trace_start"() <{level = 10 : i32, message = "bqk,bke->bqe"}> : () -> ()
    %cst_52 = arith.constant dense<0.000000e+00> : vector<2x8x8xf32>
    %133 = tpu.matmul %132, %119, %cst_52 {dimension_numbers = #tpu.dot_dimension_numbers<[2], [1], [1], [2], [0, 0, 0, 1, 1, 2], [0], [0]>} : vector<2x8x8xbf16>, vector<2x8x8xbf16>, vector<2x8x8xf32> -> vector<2x8x8xf32>
    "tpu.trace_stop"() : () -> ()
    %134 = vector.shape_cast %133 : vector<2x8x8xf32> to vector<16x8xf32>
    %135 = arith.truncf %134 : vector<16x8xf32> to vector<16x8xbf16>
    %c0_53 = arith.constant 0 : index
    %c3 = arith.constant 3 : index
    %c0_54 = arith.constant 0 : index
    %c0_55 = arith.constant 0 : index
    %136 = vector.load %arg5[%c0_53, %c3, %c0_54, %c0_55] : memref<1x4x32x24xbf16, #tpu.memory_space<vmem>>, vector<1x1x32x24xbf16>
    %137 = vector.shape_cast %136 : vector<1x1x32x24xbf16> to vector<32x24xbf16>
    %cst_56 = arith.constant dense<0.000000e+00> : vector<16x24xf32>
    %138 = tpu.matmul %32, %137, %cst_56 {dimension_numbers = #tpu.dot_dimension_numbers<[1], [0], [0], [1], [0, 0, 1, 1], [], []>} : vector<16x32xbf16>, vector<32x24xbf16>, vector<16x24xf32> -> vector<16x24xf32>
    %c0_57 = arith.constant 0 : index
    %c3_58 = arith.constant 3 : index
    %c0_59 = arith.constant 0 : index
    %c0_60 = arith.constant 0 : index
    %139 = vector.load %arg6[%c0_57, %c3_58, %c0_59, %c0_60] : memref<1x4x1x24xf32, #tpu.memory_space<vmem>>, vector<1x1x1x24xf32>
    %140 = vector.shape_cast %139 : vector<1x1x1x24xf32> to vector<1x24xf32>
    %141 = vector.broadcast %140 : vector<1x24xf32> to vector<16x24xf32>
    %142 = arith.addf %138, %141 : vector<16x24xf32>
    %143 = vector.extract_strided_slice %142 {offsets = [0, 0], sizes = [16, 8], strides = [1, 1]} : vector<16x24xf32> to vector<16x8xf32>
    %cst_61 = arith.constant 0.353553385 : f32
    %144 = vector.broadcast %cst_61 : f32 to vector<16x8xf32>
    %145 = arith.mulf %143, %144 : vector<16x8xf32>
    %146 = vector.extract_strided_slice %142 {offsets = [0, 8], sizes = [16, 8], strides = [1, 1]} : vector<16x24xf32> to vector<16x8xf32>
    %147 = vector.extract_strided_slice %142 {offsets = [0, 16], sizes = [16, 8], strides = [1, 1]} : vector<16x24xf32> to vector<16x8xf32>
    %148 = vector.shape_cast %145 : vector<16x8xf32> to vector<2x8x8xf32>
    %149 = arith.truncf %148 : vector<2x8x8xf32> to vector<2x8x8xbf16>
    %150 = vector.shape_cast %146 : vector<16x8xf32> to vector<2x8x8xf32>
    %151 = arith.truncf %150 : vector<2x8x8xf32> to vector<2x8x8xbf16>
    %152 = vector.shape_cast %147 : vector<16x8xf32> to vector<2x8x8xf32>
    %153 = arith.truncf %152 : vector<2x8x8xf32> to vector<2x8x8xbf16>
    "tpu.trace_start"() <{level = 10 : i32, message = "bqe,bke->bqk"}> : () -> ()
    %cst_62 = arith.constant dense<0.000000e+00> : vector<2x8x8xf32>
    %154 = tpu.matmul %149, %151, %cst_62 {dimension_numbers = #tpu.dot_dimension_numbers<[2], [2], [1], [1], [0, 0, 0, 1, 1, 1], [0], [0]>} : vector<2x8x8xbf16>, vector<2x8x8xbf16>, vector<2x8x8xf32> -> vector<2x8x8xf32>
    "tpu.trace_stop"() : () -> ()
    %cst_63 = arith.constant dense<0xFF800000> : vector<2x8xf32>
    %155 = vector.multi_reduction <maximumf>, %154, %cst_63 [2] : vector<2x8x8xf32> to vector<2x8xf32>
    %156 = vector.shape_cast %155 : vector<2x8xf32> to vector<2x8x1xf32>
    %157 = vector.broadcast %156 : vector<2x8x1xf32> to vector<2x8x8xf32>
    %158 = arith.subf %154, %157 : vector<2x8x8xf32>
    %159 = math.exp %158 : vector<2x8x8xf32>
    %cst_64 = arith.constant dense<0.000000e+00> : vector<2x8xf32>
    %160 = vector.multi_reduction <add>, %159, %cst_64 [2] : vector<2x8x8xf32> to vector<2x8xf32>
    %161 = vector.shape_cast %160 : vector<2x8xf32> to vector<2x8x1xf32>
    %162 = tpu.reciprocal %161 : vector<2x8x1xf32> -> vector<2x8x1xf32>
    %163 = vector.broadcast %162 : vector<2x8x1xf32> to vector<2x8x8xf32>
    %164 = arith.mulf %159, %163 : vector<2x8x8xf32>
    %165 = arith.addf %131, %164 : vector<2x8x8xf32>
    %166 = arith.truncf %164 : vector<2x8x8xf32> to vector<2x8x8xbf16>
    "tpu.trace_start"() <{level = 10 : i32, message = "bqk,bke->bqe"}> : () -> ()
    %cst_65 = arith.constant dense<0.000000e+00> : vector<2x8x8xf32>
    %167 = tpu.matmul %166, %153, %cst_65 {dimension_numbers = #tpu.dot_dimension_numbers<[2], [1], [1], [2], [0, 0, 0, 1, 1, 2], [0], [0]>} : vector<2x8x8xbf16>, vector<2x8x8xbf16>, vector<2x8x8xf32> -> vector<2x8x8xf32>
    "tpu.trace_stop"() : () -> ()
    %168 = vector.shape_cast %167 : vector<2x8x8xf32> to vector<16x8xf32>
    %169 = arith.truncf %168 : vector<16x8xf32> to vector<16x8xbf16>
    %170 = tpu.concatenate %67, %101, %135, %169 in 1 : vector<16x8xbf16>, vector<16x8xbf16>, vector<16x8xbf16>, vector<16x8xbf16> -> vector<16x32xbf16>
    %c0_66 = arith.constant 0 : index
    %c0_67 = arith.constant 0 : index
    %c0_68 = arith.constant 0 : index
    %171 = vector.load %arg7[%c0_66, %c0_67, %c0_68] : memref<1x32x32xbf16, #tpu.memory_space<vmem>>, vector<1x32x32xbf16>
    %172 = vector.shape_cast %171 : vector<1x32x32xbf16> to vector<32x32xbf16>
    %cst_69 = arith.constant dense<0.000000e+00> : vector<16x32xf32>
    %173 = tpu.matmul %170, %172, %cst_69 {dimension_numbers = #tpu.dot_dimension_numbers<[1], [0], [0], [1], [0, 0, 1, 1], [], []>} : vector<16x32xbf16>, vector<32x32xbf16>, vector<16x32xf32> -> vector<16x32xf32>
    %174 = arith.addf %3, %173 : vector<16x32xf32>
    %c0_70 = arith.constant 0 : index
    %c0_71 = arith.constant 0 : index
    %c0_72 = arith.constant 0 : index
    %175 = vector.load %arg8[%c0_70, %c0_71, %c0_72] : memref<1x1x32xf32, #tpu.memory_space<vmem>>, vector<1x1x32xf32>
    %176 = vector.shape_cast %175 : vector<1x1x32xf32> to vector<1x32xf32>
    %177 = vector.broadcast %176 : vector<1x32xf32> to vector<16x32xf32>
    %178 = arith.addf %174, %177 : vector<16x32xf32>
    %cst_73 = arith.constant 2.500000e-01 : f32
    %179 = vector.broadcast %cst_73 : f32 to vector<2x8x8xf32>
    %180 = arith.mulf %165, %179 : vector<2x8x8xf32>
    %181 = arith.truncf %180 : vector<2x8x8xf32> to vector<2x8x8xbf16>
    %cst_74 = arith.constant 0.000000e+00 : bf16
    %182 = vector.broadcast %cst_74 : bf16 to vector<2x8x120xbf16>
    %183 = tpu.concatenate %181, %182 in 2 : vector<2x8x8xbf16>, vector<2x8x120xbf16> -> vector<2x8x128xbf16>
    %c0_75 = arith.constant 0 : index
    %c0_76 = arith.constant 0 : index
    %c0_77 = arith.constant 0 : index
    %c0_78 = arith.constant 0 : index
    %184 = vector.load %arg16[%c0_75, %c0_76, %c0_77, %c0_78] : memref<1x2x8x128xbf16, #tpu.memory_space<vmem>>, vector<1x2x8x128xbf16>
    %185 = vector.shape_cast %184 : vector<1x2x8x128xbf16> to vector<2x8x128xbf16>
    %186 = vector.shape_cast %183 : vector<2x8x128xbf16> to vector<1x2x8x128xbf16>
    tpu.vector_store %arg16[%c0_75, %c0_76, %c0_77, %c0_78], %186 {strides = array<i32>} : memref<1x2x8x128xbf16, #tpu.memory_space<vmem>>, vector<1x2x8x128xbf16>,
    %c0_79 = arith.constant 0 : index
    %c0_80 = arith.constant 0 : index
    %c0_81 = arith.constant 0 : index
    %187 = vector.load %arg9[%c0_79, %c0_80, %c0_81] : memref<1x1x32xf32, #tpu.memory_space<vmem>>, vector<1x1x32xf32>
    %188 = vector.shape_cast %187 : vector<1x1x32xf32> to vector<1x32xf32>
    %c0_82 = arith.constant 0 : index
    %c0_83 = arith.constant 0 : index
    %c0_84 = arith.constant 0 : index
    %189 = vector.load %arg10[%c0_82, %c0_83, %c0_84] : memref<1x1x32xf32, #tpu.memory_space<vmem>>, vector<1x1x32xf32>
    %190 = vector.shape_cast %189 : vector<1x1x32xf32> to vector<1x32xf32>
    %cst_85 = arith.constant dense<0.000000e+00> : vector<16xf32>
    %191 = vector.multi_reduction <add>, %178, %cst_85 [1] : vector<16x32xf32> to vector<16xf32>
    %192 = vector.shape_cast %191 : vector<16xf32> to vector<16x1xf32>
    %cst_86 = arith.constant 3.200000e+01 : f32
    %193 = vector.broadcast %cst_86 : f32 to vector<16x1xf32>
    %194 = arith.divf %192, %193 : vector<16x1xf32>
    %195 = vector.broadcast %194 : vector<16x1xf32> to vector<16x32xf32>
    %196 = arith.subf %178, %195 : vector<16x32xf32>
    %197 = vector.broadcast %194 : vector<16x1xf32> to vector<16x32xf32>
    %198 = arith.subf %178, %197 : vector<16x32xf32>
    %199 = arith.mulf %196, %198 : vector<16x32xf32>
    %cst_87 = arith.constant dense<0.000000e+00> : vector<16xf32>
    %200 = vector.multi_reduction <add>, %199, %cst_87 [1] : vector<16x32xf32> to vector<16xf32>
    %201 = vector.shape_cast %200 : vector<16xf32> to vector<16x1xf32>
    %cst_88 = arith.constant 3.200000e+01 : f32
    %202 = vector.broadcast %cst_88 : f32 to vector<16x1xf32>
    %203 = arith.divf %201, %202 : vector<16x1xf32>
    %204 = vector.broadcast %194 : vector<16x1xf32> to vector<16x32xf32>
    %205 = arith.subf %178, %204 : vector<16x32xf32>
    %cst_89 = arith.constant 9.99999974E-6 : f32
    %206 = vector.broadcast %cst_89 : f32 to vector<16x1xf32>
    %207 = arith.addf %203, %206 : vector<16x1xf32>
    %208 = math.rsqrt %207 : vector<16x1xf32>
    %209 = vector.broadcast %208 : vector<16x1xf32> to vector<16x32xf32>
    %210 = arith.mulf %205, %209 : vector<16x32xf32>
    %211 = vector.broadcast %188 : vector<1x32xf32> to vector<16x32xf32>
    %212 = arith.mulf %210, %211 : vector<16x32xf32>
    %213 = vector.broadcast %190 : vector<1x32xf32> to vector<16x32xf32>
    %214 = arith.addf %212, %213 : vector<16x32xf32>
    %215 = arith.truncf %214 : vector<16x32xf32> to vector<16x32xbf16>
    %c0_90 = arith.constant 0 : index
    %c0_91 = arith.constant 0 : index
    %c0_92 = arith.constant 0 : index
    %216 = vector.load %arg11[%c0_90, %c0_91, %c0_92] : memref<1x32x64xbf16, #tpu.memory_space<vmem>>, vector<1x32x64xbf16>
    %217 = vector.shape_cast %216 : vector<1x32x64xbf16> to vector<32x64xbf16>
    %cst_93 = arith.constant dense<0.000000e+00> : vector<16x64xf32>
    %218 = tpu.matmul %215, %217, %cst_93 {dimension_numbers = #tpu.dot_dimension_numbers<[1], [0], [0], [1], [0, 0, 1, 1], [], []>} : vector<16x32xbf16>, vector<32x64xbf16>, vector<16x64xf32> -> vector<16x64xf32>
    %c0_94 = arith.constant 0 : index
    %c0_95 = arith.constant 0 : index
    %c0_96 = arith.constant 0 : index
    %219 = vector.load %arg12[%c0_94, %c0_95, %c0_96] : memref<1x1x64xf32, #tpu.memory_space<vmem>>, vector<1x1x64xf32>
    %220 = vector.shape_cast %219 : vector<1x1x64xf32> to vector<1x64xf32>
    %221 = vector.broadcast %220 : vector<1x64xf32> to vector<16x64xf32>
    %222 = arith.addf %218, %221 : vector<16x64xf32>
    %cst_97 = arith.constant 5.000000e-01 : f32
    %223 = vector.broadcast %cst_97 : f32 to vector<16x64xf32>
    %224 = arith.mulf %223, %222 : vector<16x64xf32>
    %cst_98 = arith.constant 4.471500e-02 : f32
    %225 = vector.broadcast %cst_98 : f32 to vector<16x64xf32>
    %226 = arith.mulf %225, %222 : vector<16x64xf32>
    %227 = arith.mulf %226, %222 : vector<16x64xf32>
    %228 = arith.mulf %227, %222 : vector<16x64xf32>
    %229 = arith.addf %222, %228 : vector<16x64xf32>
    %cst_99 = arith.constant 0.797884583 : f32
    %230 = vector.broadcast %cst_99 : f32 to vector<16x64xf32>
    %231 = arith.mulf %230, %229 : vector<16x64xf32>
    %232 = math.tanh %231 : vector<16x64xf32>
    %cst_100 = arith.constant 1.000000e+00 : f32
    %233 = vector.broadcast %cst_100 : f32 to vector<16x64xf32>
    %234 = arith.addf %233, %232 : vector<16x64xf32>
    %235 = arith.mulf %224, %234 : vector<16x64xf32>
    %236 = arith.truncf %235 : vector<16x64xf32> to vector<16x64xbf16>
    %c0_101 = arith.constant 0 : index
    %c0_102 = arith.constant 0 : index
    %c0_103 = arith.constant 0 : index
    %237 = vector.load %arg13[%c0_101, %c0_102, %c0_103] : memref<1x64x32xbf16, #tpu.memory_space<vmem>>, vector<1x64x32xbf16>
    %238 = vector.shape_cast %237 : vector<1x64x32xbf16> to vector<64x32xbf16>
    %cst_104 = arith.constant dense<0.000000e+00> : vector<16x32xf32>
    %239 = tpu.matmul %236, %238, %cst_104 {dimension_numbers = #tpu.dot_dimension_numbers<[1], [0], [0], [1], [0, 0, 1, 1], [], []>} : vector<16x64xbf16>, vector<64x32xbf16>, vector<16x32xf32> -> vector<16x32xf32>
    %240 = arith.addf %178, %239 : vector<16x32xf32>
    %c0_105 = arith.constant 0 : index
    %c0_106 = arith.constant 0 : index
    %c0_107 = arith.constant 0 : index
    %241 = vector.load %arg14[%c0_105, %c0_106, %c0_107] : memref<1x1x32xf32, #tpu.memory_space<vmem>>, vector<1x1x32xf32>
    %242 = vector.shape_cast %241 : vector<1x1x32xf32> to vector<1x32xf32>
    %243 = vector.broadcast %242 : vector<1x32xf32> to vector<16x32xf32>
    %244 = arith.addf %240, %243 : vector<16x32xf32>
    %c0_108 = arith.constant 0 : index
    %c0_109 = arith.constant 0 : index
    %245 = vector.load %arg17[%c0_108, %c0_109] : memref<16x32xf32, #tpu.memory_space<vmem>>, vector<16x32xf32>
    tpu.vector_store %arg17[%c0_108, %c0_109], %244 {strides = array<i32>} : memref<16x32xf32, #tpu.memory_space<vmem>>, vector<16x32xf32>,
    %c1_i32 = arith.constant 1 : i32
    %246 = arith.cmpi eq, %arg1, %c1_i32 : i32
    %247 = arith.extui %246 : i1 to i32
    %c0_i32_110 = arith.constant 0 : i32
    %248 = arith.cmpi ne, %247, %c0_i32_110 : i32
    scf.if %248 {
      %cst_111 = arith.constant 0.000000e+00 : f32
      %249 = vector.broadcast %cst_111 : f32 to vector<16x96xf32>
      %250 = tpu.concatenate %244, %249 in 1 : vector<16x32xf32>, vector<16x96xf32> -> vector<16x128xf32>
      %c0_112 = arith.constant 0 : index
      %c0_113 = arith.constant 0 : index
      %251 = vector.load %arg15[%c0_112, %c0_113] : memref<16x128xf32, #tpu.memory_space<vmem>>, vector<16x128xf32>
      tpu.vector_store %arg15[%c0_112, %c0_113], %250 {strides = array<i32>} : memref<16x128xf32, #tpu.memory_space<vmem>>, vector<16x128xf32>,
    } else {
    }
    return
  }
  func.func @transform_0(%arg0: i32, %arg1: i32) -> (i32, i32) {
    %c0_i32 = arith.constant 0 : i32
    %c0_i32_0 = arith.constant 0 : i32
    return %arg0, %c0_i32 : i32, i32
  }
  func.func @transform_1(%arg0: i32, %arg1: i32) -> (i32, i32, i32) {
    %c0_i32 = arith.constant 0 : i32
    %c0_i32_0 = arith.constant 0 : i32
    %c0_i32_1 = arith.constant 0 : i32
    return %arg1, %c0_i32, %c0_i32_0 : i32, i32, i32
  }
  func.func @transform_2(%arg0: i32, %arg1: i32) -> (i32, i32, i32) {
    %c0_i32 = arith.constant 0 : i32
    %c0_i32_0 = arith.constant 0 : i32
    %c0_i32_1 = arith.constant 0 : i32
    return %arg1, %c0_i32, %c0_i32_0 : i32, i32, i32
  }
  func.func @transform_3(%arg0: i32, %arg1: i32) -> (i32, i32, i32, i32) {
    %c0_i32 = arith.constant 0 : i32
    %c0_i32_0 = arith.constant 0 : i32
    %c0_i32_1 = arith.constant 0 : i32
    %c0_i32_2 = arith.constant 0 : i32
    return %arg1, %c0_i32, %c0_i32_0, %c0_i32_1 : i32, i32, i32, i32
  }
  func.func @transform_4(%arg0: i32, %arg1: i32) -> (i32, i32, i32, i32) {
    %c0_i32 = arith.constant 0 : i32
    %c0_i32_0 = arith.constant 0 : i32
    %c0_i32_1 = arith.constant 0 : i32
    %c0_i32_2 = arith.constant 0 : i32
    return %arg1, %c0_i32, %c0_i32_0, %c0_i32_1 : i32, i32, i32, i32
  }
  func.func @transform_5(%arg0: i32, %arg1: i32) -> (i32, i32, i32) {
    %c0_i32 = arith.constant 0 : i32
    %c0_i32_0 = arith.constant 0 : i32
    %c0_i32_1 = arith.constant 0 : i32
    return %arg1, %c0_i32, %c0_i32_0 : i32, i32, i32
  }
  func.func @transform_6(%arg0: i32, %arg1: i32) -> (i32, i32, i32) {
    %c0_i32 = arith.constant 0 : i32
    %c0_i32_0 = arith.constant 0 : i32
    %c0_i32_1 = arith.constant 0 : i32
    return %arg1, %c0_i32, %c0_i32_0 : i32, i32, i32
  }
  func.func @transform_7(%arg0: i32, %arg1: i32) -> (i32, i32, i32) {
    %c0_i32 = arith.constant 0 : i32
    %c0_i32_0 = arith.constant 0 : i32
    %c0_i32_1 = arith.constant 0 : i32
    return %arg1, %c0_i32, %c0_i32_0 : i32, i32, i32
  }
  func.func @transform_8(%arg0: i32, %arg1: i32) -> (i32, i32, i32) {
    %c0_i32 = arith.constant 0 : i32
    %c0_i32_0 = arith.constant 0 : i32
    %c0_i32_1 = arith.constant 0 : i32
    return %arg1, %c0_i32, %c0_i32_0 : i32, i32, i32
  }
  func.func @transform_9(%arg0: i32, %arg1: i32) -> (i32, i32, i32) {
    %c0_i32 = arith.constant 0 : i32
    %c0_i32_0 = arith.constant 0 : i32
    %c0_i32_1 = arith.constant 0 : i32
    return %arg1, %c0_i32, %c0_i32_0 : i32, i32, i32
  }
  func.func @transform_10(%arg0: i32, %arg1: i32) -> (i32, i32, i32) {
    %c0_i32 = arith.constant 0 : i32
    %c0_i32_0 = arith.constant 0 : i32
    %c0_i32_1 = arith.constant 0 : i32
    return %arg1, %c0_i32, %c0_i32_0 : i32, i32, i32
  }
  func.func @transform_11(%arg0: i32, %arg1: i32) -> (i32, i32, i32) {
    %c0_i32 = arith.constant 0 : i32
    %c0_i32_0 = arith.constant 0 : i32
    %c0_i32_1 = arith.constant 0 : i32
    return %arg1, %c0_i32, %c0_i32_0 : i32, i32, i32
  }
  func.func @transform_12(%arg0: i32, %arg1: i32) -> (i32, i32, i32) {
    %c0_i32 = arith.constant 0 : i32
    %c0_i32_0 = arith.constant 0 : i32
    %c0_i32_1 = arith.constant 0 : i32
    return %arg1, %c0_i32, %c0_i32_0 : i32, i32, i32
  }
  func.func @transform_13(%arg0: i32, %arg1: i32) -> (i32, i32) {
    %c0_i32 = arith.constant 0 : i32
    %c0_i32_0 = arith.constant 0 : i32
    return %arg0, %c0_i32 : i32, i32
  }
  func.func @transform_14(%arg0: i32, %arg1: i32) -> (i32, i32, i32, i32) {
    %c0_i32 = arith.constant 0 : i32
    %c0_i32_0 = arith.constant 0 : i32
    %c0_i32_1 = arith.constant 0 : i32
    return %arg1, %arg0, %c0_i32, %c0_i32_0 : i32, i32, i32, i32
  }
}

</mosaic_0001>

<llo_original>
// kernel: tpu_custom_call.1
$region0: #{tpu_custom_call.1}
  #allocation0 [shape = 'u32[]', space=smem, size = 0x4, offset = 0x4, fixed_abs, tag = 'smem constant byte address 0x4 - core index']
  #allocation1 [shape = 'u32[144,128]{1,0:T(1,128)}', space=vmem, size = 0x12000, scoped, tag = 'internal scratch']
  #allocation2 [shape = 'f32[16,32]{1,0:T(8,128)}', space=vmem, size = 0x2000, scoped, tag = 'scratch operand']
  %s0 = inlined_call_operand.vmem [shape: f32[16,32], index: 0, kind: input, shape index: {}]
  %s1 = inlined_call_operand.vmem [shape: f32[2,1,32], index: 1, kind: input, shape index: {}]
  %s2 = inlined_call_operand.vmem [shape: f32[2,1,32], index: 2, kind: input, shape index: {}]
  %s3 = inlined_call_operand.vmem [shape: bf16[2,4,32,24], index: 3, kind: input, shape index: {}]
  %s4 = inlined_call_operand.vmem [shape: f32[2,4,1,24], index: 4, kind: input, shape index: {}]
  %s5 = inlined_call_operand.vmem [shape: bf16[2,32,32], index: 5, kind: input, shape index: {}]
  %s6 = inlined_call_operand.vmem [shape: f32[2,1,32], index: 6, kind: input, shape index: {}]
  %s7 = inlined_call_operand.vmem [shape: f32[2,1,32], index: 7, kind: input, shape index: {}]
  %s8 = inlined_call_operand.vmem [shape: f32[2,1,32], index: 8, kind: input, shape index: {}]
  %s9 = inlined_call_operand.vmem [shape: bf16[2,32,64], index: 9, kind: input, shape index: {}]
  %s10 = inlined_call_operand.vmem [shape: f32[2,1,64], index: 10, kind: input, shape index: {}]
  %s11 = inlined_call_operand.vmem [shape: bf16[2,64,32], index: 11, kind: input, shape index: {}]
  %s12 = inlined_call_operand.vmem [shape: f32[2,1,32], index: 12, kind: input, shape index: {}]
  %s13 = inlined_call_operand.hbm [shape: f32[16,128], index: 13, kind: output, shape index: {0}]
  %s14 = inlined_call_operand.hbm [shape: bf16[2,2,8,128], index: 14, kind: output, shape index: {1}]
  %15 = xla_tuple %s13, %s14
  %s16 = sld [smem:[#allocation0]]
  $region101: #{tpu_custom_call.1} parent=0
    _
  %s18 = ssub.s32 1, %s16
  %s19 = scalar_select 0, %s18, %s16
  $region1: #{tpu_custom_call.1} parent=0
    #allocation3 [shape = 'u8[8192]{0}', space=vmem, size = 0x2000, scoped, tag = 'output window, operand 0, single buffered']
    #allocation4 [shape = 's32[2]{0}', space=sflag, size = 0x8, scoped, tag = 'scoped memory for tpu_custom_call.1']
    #allocation5 [shape = 'u8[8192]{0}', space=vmem, size = 0x2000, scoped, tag = 'output window, operand 1']
    #allocation6 [shape = 's32[2]{0}', space=sflag, size = 0x8, scoped, tag = 'scoped memory for tpu_custom_call.1']
    %20 = vsyncpa [#allocation4], 0
    %21 = vsyncpa [#allocation6], 0
    %s22 = scalar_lea.sflag [#allocation6], 1
    %23 = vsyncpa %s22, 0
    loop: start=0, step=1, limit=4
    $region2: #{tpu_custom_call.1} parent=1 // loop_pre_header
      _
    $region3: #{tpu_custom_call.1} parent=1 // loop_header
      %s25 = sphi 0, %s29
      %p26 = scmp.ge.s32.totalorder %s25, 4
      %s32 = sphi 0, %s44
      %s33 = sphi 0, %s40
      %s34 = sphi 0, %s32
      %s35 = sphi 0, %s33
      %s36 = sphi 0, %s34
      %s37 = sphi 0, %s35
      %s47 = sphi 0, %s49
      %s50 = sphi 0, %s47
      %s51 = sphi 0, %s50
      %s67 = sphi 0, %s51
      %s73 = sphi 0, %s75
      %s76 = sphi 0, %s73
      %s77 = sphi 0, %s76
      %s93 = sphi 0, %s77
      %s99 = sphi 0, %s101
      %s102 = sphi 0, %s99
      %s103 = sphi 0, %s102
      %s119 = sphi 0, %s103
      %s125 = sphi 0, %s127
      %s128 = sphi 0, %s125
      %s129 = sphi 0, %s128
      %s145 = sphi 0, %s129
      %s151 = sphi 0, %s153
      %s154 = sphi 0, %s151
      %s155 = sphi 0, %s154
      %s171 = sphi 0, %s155
      %s177 = sphi 0, %s179
      %s180 = sphi 0, %s177
      %s181 = sphi 0, %s180
      %s197 = sphi 0, %s181
      %s203 = sphi 0, %s205
      %s206 = sphi 0, %s203
      %s207 = sphi 0, %s206
      %s223 = sphi 0, %s207
      %s229 = sphi 0, %s231
      %s232 = sphi 0, %s229
      %s233 = sphi 0, %s232
      %s249 = sphi 0, %s233
      %s255 = sphi 0, %s257
      %s258 = sphi 0, %s255
      %s259 = sphi 0, %s258
      %s275 = sphi 0, %s259
      %s281 = sphi 0, %s283
      %s284 = sphi 0, %s281
      %s285 = sphi 0, %s284
      %s301 = sphi 0, %s285
      %s307 = sphi 0, %s309
      %s310 = sphi 0, %s307
      %s311 = sphi 0, %s310
      %s327 = sphi 0, %s311
      %s333 = sphi 0, %s335
      %s336 = sphi 0, %s333
      %s337 = sphi 0, %s336
      %s353 = sphi 0, %s337
      %s359 = sphi 0, %s361
      %s362 = sphi 0, %s359
      %s363 = sphi 0, %s362
      %s379 = sphi 0, %s363
      %s385 = sphi 0, %s387
      %s388 = sphi 0, %s385
      %s389 = sphi 0, %s388
      %s405 = sphi 0, %s389
      %s413 = sphi 0, %s415
      %s416 = sphi 0, %s413
      %s417 = sphi 0, %s416
      %s433 = sphi 0, %s417
    $region4: #{tpu_custom_call.1} parent=1 // loop_header_branch
      %28 = sbr.rel (%p26) target = $region8
    $region5: #{tpu_custom_call.1} parent=1 // loop_body
      %s30 = ssub.s32 %s25, 1
      %s31 = ssub.s32 %s25, 2
      %s38 = sadd.s32 1, %s33
      %p39 = scmp.ge.s32.totalorder %s38, 2
      %s40 = scalar_select %p39, 0, %s38
      %s41 = sadd.s32 1, %s32
      %s42 = scalar_select %p39, %s41, %s32
      %p43 = scmp.ge.s32.totalorder %s42, 1
      %s44 = scalar_select %p43, 0, %s42
      %s45 = ssub.s32 %s32, %s44
      %p46 = scmp.eq.s32.totalorder %s45, 0
      %s48 = sadd.s32 %s47, 1
      %s49 = scalar_select %p46, %s47, %s48
      %p52 = pneg %p46
      %p53 = scmp.eq.s32.totalorder %s25, 1
      %p54 = por %p52, %p53
      %p55 = scmp.ne.s32.totalorder %s47, %s50
      %p56 = scmp.eq.s32.totalorder %s25, 0
      %p57 = por %p55, %p56
      %p58 = scmp.ne.s32.totalorder %s47, %s50
      %p59 = scmp.eq.s32.totalorder %s30, 1
      %p60 = por %p58, %p59
      %p61 = scmp.ne.s32.totalorder %s50, %s51
      %p62 = scmp.eq.s32.totalorder %s30, 0
      %p63 = por %p61, %p62
      %p64 = scmp.ne.s32.totalorder %s50, %s51
      %p65 = scmp.eq.s32.totalorder %s31, 1
      %p66 = por %p64, %p65
      %p68 = scmp.ne.s32.totalorder %s51, %s67
      %p69 = scmp.eq.s32.totalorder %s31, 0
      %p70 = por %p68, %p69
      %s71 = ssub.s32 %s33, %s40
      %p72 = scmp.eq.s32.totalorder %s71, 0
      %s74 = sadd.s32 %s73, 1
      %s75 = scalar_select %p72, %s73, %s74
      %p78 = pneg %p72
      %p79 = scmp.eq.s32.totalorder %s25, 1
      %p80 = por %p78, %p79
      %p81 = scmp.ne.s32.totalorder %s73, %s76
      %p82 = scmp.eq.s32.totalorder %s25, 0
      %p83 = por %p81, %p82
      %p84 = scmp.ne.s32.totalorder %s73, %s76
      %p85 = scmp.eq.s32.totalorder %s30, 1
      %p86 = por %p84, %p85
      %p87 = scmp.ne.s32.totalorder %s76, %s77
      %p88 = scmp.eq.s32.totalorder %s30, 0
      %p89 = por %p87, %p88
      %p90 = scmp.ne.s32.totalorder %s76, %s77
      %p91 = scmp.eq.s32.totalorder %s31, 1
      %p92 = por %p90, %p91
      %p94 = scmp.ne.s32.totalorder %s77, %s93
      %p95 = scmp.eq.s32.totalorder %s31, 0
      %p96 = por %p94, %p95
      %s97 = ssub.s32 %s33, %s40
      %p98 = scmp.eq.s32.totalorder %s97, 0
      %s100 = sadd.s32 %s99, 1
      %s101 = scalar_select %p98, %s99, %s100
      %p104 = pneg %p98
      %p105 = scmp.eq.s32.totalorder %s25, 1
      %p106 = por %p104, %p105
      %p107 = scmp.ne.s32.totalorder %s99, %s102
      %p108 = scmp.eq.s32.totalorder %s25, 0
      %p109 = por %p107, %p108
      %p110 = scmp.ne.s32.totalorder %s99, %s102
      %p111 = scmp.eq.s32.totalorder %s30, 1
      %p112 = por %p110, %p111
      %p113 = scmp.ne.s32.totalorder %s102, %s103
      %p114 = scmp.eq.s32.totalorder %s30, 0
      %p115 = por %p113, %p114
      %p116 = scmp.ne.s32.totalorder %s102, %s103
      %p117 = scmp.eq.s32.totalorder %s31, 1
      %p118 = por %p116, %p117
      %p120 = scmp.ne.s32.totalorder %s103, %s119
      %p121 = scmp.eq.s32.totalorder %s31, 0
      %p122 = por %p120, %p121
      %s123 = ssub.s32 %s33, %s40
      %p124 = scmp.eq.s32.totalorder %s123, 0
      %s126 = sadd.s32 %s125, 1
      %s127 = scalar_select %p124, %s125, %s126
      %p130 = pneg %p124
      %p131 = scmp.eq.s32.totalorder %s25, 1
      %p132 = por %p130, %p131
      %p133 = scmp.ne.s32.totalorder %s125, %s128
      %p134 = scmp.eq.s32.totalorder %s25, 0
      %p135 = por %p133, %p134
      %p136 = scmp.ne.s32.totalorder %s125, %s128
      %p137 = scmp.eq.s32.totalorder %s30, 1
      %p138 = por %p136, %p137
      %p139 = scmp.ne.s32.totalorder %s128, %s129
      %p140 = scmp.eq.s32.totalorder %s30, 0
      %p141 = por %p139, %p140
      %p142 = scmp.ne.s32.totalorder %s128, %s129
      %p143 = scmp.eq.s32.totalorder %s31, 1
      %p144 = por %p142, %p143
      %p146 = scmp.ne.s32.totalorder %s129, %s145
      %p147 = scmp.eq.s32.totalorder %s31, 0
      %p148 = por %p146, %p147
      %s149 = ssub.s32 %s33, %s40
      %p150 = scmp.eq.s32.totalorder %s149, 0
      %s152 = sadd.s32 %s151, 1
      %s153 = scalar_select %p150, %s151, %s152
      %p156 = pneg %p150
      %p157 = scmp.eq.s32.totalorder %s25, 1
      %p158 = por %p156, %p157
      %p159 = scmp.ne.s32.totalorder %s151, %s154
      %p160 = scmp.eq.s32.totalorder %s25, 0
      %p161 = por %p159, %p160
      %p162 = scmp.ne.s32.totalorder %s151, %s154
      %p163 = scmp.eq.s32.totalorder %s30, 1
      %p164 = por %p162, %p163
      %p165 = scmp.ne.s32.totalorder %s154, %s155
      %p166 = scmp.eq.s32.totalorder %s30, 0
      %p167 = por %p165, %p166
      %p168 = scmp.ne.s32.totalorder %s154, %s155
      %p169 = scmp.eq.s32.totalorder %s31, 1
      %p170 = por %p168, %p169
      %p172 = scmp.ne.s32.totalorder %s155, %s171
      %p173 = scmp.eq.s32.totalorder %s31, 0
      %p174 = por %p172, %p173
      %s175 = ssub.s32 %s33, %s40
      %p176 = scmp.eq.s32.totalorder %s175, 0
      %s178 = sadd.s32 %s177, 1
      %s179 = scalar_select %p176, %s177, %s178
      %p182 = pneg %p176
      %p183 = scmp.eq.s32.totalorder %s25, 1
      %p184 = por %p182, %p183
      %p185 = scmp.ne.s32.totalorder %s177, %s180
      %p186 = scmp.eq.s32.totalorder %s25, 0
      %p187 = por %p185, %p186
      %p188 = scmp.ne.s32.totalorder %s177, %s180
      %p189 = scmp.eq.s32.totalorder %s30, 1
      %p190 = por %p188, %p189
      %p191 = scmp.ne.s32.totalorder %s180, %s181
      %p192 = scmp.eq.s32.totalorder %s30, 0
      %p193 = por %p191, %p192
      %p194 = scmp.ne.s32.totalorder %s180, %s181
      %p195 = scmp.eq.s32.totalorder %s31, 1
      %p196 = por %p194, %p195
      %p198 = scmp.ne.s32.totalorder %s181, %s197
      %p199 = scmp.eq.s32.totalorder %s31, 0
      %p200 = por %p198, %p199
      %s201 = ssub.s32 %s33, %s40
      %p202 = scmp.eq.s32.totalorder %s201, 0
      %s204 = sadd.s32 %s203, 1
      %s205 = scalar_select %p202, %s203, %s204
      %p208 = pneg %p202
      %p209 = scmp.eq.s32.totalorder %s25, 1
      %p210 = por %p208, %p209
      %p211 = scmp.ne.s32.totalorder %s203, %s206
      %p212 = scmp.eq.s32.totalorder %s25, 0
      %p213 = por %p211, %p212
      %p214 = scmp.ne.s32.totalorder %s203, %s206
      %p215 = scmp.eq.s32.totalorder %s30, 1
      %p216 = por %p214, %p215
      %p217 = scmp.ne.s32.totalorder %s206, %s207
      %p218 = scmp.eq.s32.totalorder %s30, 0
      %p219 = por %p217, %p218
      %p220 = scmp.ne.s32.totalorder %s206, %s207
      %p221 = scmp.eq.s32.totalorder %s31, 1
      %p222 = por %p220, %p221
      %p224 = scmp.ne.s32.totalorder %s207, %s223
      %p225 = scmp.eq.s32.totalorder %s31, 0
      %p226 = por %p224, %p225
      %s227 = ssub.s32 %s33, %s40
      %p228 = scmp.eq.s32.totalorder %s227, 0
      %s230 = sadd.s32 %s229, 1
      %s231 = scalar_select %p228, %s229, %s230
      %p234 = pneg %p228
      %p235 = scmp.eq.s32.totalorder %s25, 1
      %p236 = por %p234, %p235
      %p237 = scmp.ne.s32.totalorder %s229, %s232
      %p238 = scmp.eq.s32.totalorder %s25, 0
      %p239 = por %p237, %p238
      %p240 = scmp.ne.s32.totalorder %s229, %s232
      %p241 = scmp.eq.s32.totalorder %s30, 1
      %p242 = por %p240, %p241
      %p243 = scmp.ne.s32.totalorder %s232, %s233
      %p244 = scmp.eq.s32.totalorder %s30, 0
      %p245 = por %p243, %p244
      %p246 = scmp.ne.s32.totalorder %s232, %s233
      %p247 = scmp.eq.s32.totalorder %s31, 1
      %p248 = por %p246, %p247
      %p250 = scmp.ne.s32.totalorder %s233, %s249
      %p251 = scmp.eq.s32.totalorder %s31, 0
      %p252 = por %p250, %p251
      %s253 = ssub.s32 %s33, %s40
      %p254 = scmp.eq.s32.totalorder %s253, 0
      %s256 = sadd.s32 %s255, 1
      %s257 = scalar_select %p254, %s255, %s256
      %p260 = pneg %p254
      %p261 = scmp.eq.s32.totalorder %s25, 1
      %p262 = por %p260, %p261
      %p263 = scmp.ne.s32.totalorder %s255, %s258
      %p264 = scmp.eq.s32.totalorder %s25, 0
      %p265 = por %p263, %p264
      %p266 = scmp.ne.s32.totalorder %s255, %s258
      %p267 = scmp.eq.s32.totalorder %s30, 1
      %p268 = por %p266, %p267
      %p269 = scmp.ne.s32.totalorder %s258, %s259
      %p270 = scmp.eq.s32.totalorder %s30, 0
      %p271 = por %p269, %p270
      %p272 = scmp.ne.s32.totalorder %s258, %s259
      %p273 = scmp.eq.s32.totalorder %s31, 1
      %p274 = por %p272, %p273
      %p276 = scmp.ne.s32.totalorder %s259, %s275
      %p277 = scmp.eq.s32.totalorder %s31, 0
      %p278 = por %p276, %p277
      %s279 = ssub.s32 %s33, %s40
      %p280 = scmp.eq.s32.totalorder %s279, 0
      %s282 = sadd.s32 %s281, 1
      %s283 = scalar_select %p280, %s281, %s282
      %p286 = pneg %p280
      %p287 = scmp.eq.s32.totalorder %s25, 1
      %p288 = por %p286, %p287
      %p289 = scmp.ne.s32.totalorder %s281, %s284
      %p290 = scmp.eq.s32.totalorder %s25, 0
      %p291 = por %p289, %p290
      %p292 = scmp.ne.s32.totalorder %s281, %s284
      %p293 = scmp.eq.s32.totalorder %s30, 1
      %p294 = por %p292, %p293
      %p295 = scmp.ne.s32.totalorder %s284, %s285
      %p296 = scmp.eq.s32.totalorder %s30, 0
      %p297 = por %p295, %p296
      %p298 = scmp.ne.s32.totalorder %s284, %s285
      %p299 = scmp.eq.s32.totalorder %s31, 1
      %p300 = por %p298, %p299
      %p302 = scmp.ne.s32.totalorder %s285, %s301
      %p303 = scmp.eq.s32.totalorder %s31, 0
      %p304 = por %p302, %p303
      %s305 = ssub.s32 %s33, %s40
      %p306 = scmp.eq.s32.totalorder %s305, 0
      %s308 = sadd.s32 %s307, 1
      %s309 = scalar_select %p306, %s307, %s308
      %p312 = pneg %p306
      %p313 = scmp.eq.s32.totalorder %s25, 1
      %p314 = por %p312, %p313
      %p315 = scmp.ne.s32.totalorder %s307, %s310
      %p316 = scmp.eq.s32.totalorder %s25, 0
      %p317 = por %p315, %p316
      %p318 = scmp.ne.s32.totalorder %s307, %s310
      %p319 = scmp.eq.s32.totalorder %s30, 1
      %p320 = por %p318, %p319
      %p321 = scmp.ne.s32.totalorder %s310, %s311
      %p322 = scmp.eq.s32.totalorder %s30, 0
      %p323 = por %p321, %p322
      %p324 = scmp.ne.s32.totalorder %s310, %s311
      %p325 = scmp.eq.s32.totalorder %s31, 1
      %p326 = por %p324, %p325
      %p328 = scmp.ne.s32.totalorder %s311, %s327
      %p329 = scmp.eq.s32.totalorder %s31, 0
      %p330 = por %p328, %p329
      %s331 = ssub.s32 %s33, %s40
      %p332 = scmp.eq.s32.totalorder %s331, 0
      %s334 = sadd.s32 %s333, 1
      %s335 = scalar_select %p332, %s333, %s334
      %p338 = pneg %p332
      %p339 = scmp.eq.s32.totalorder %s25, 1
      %p340 = por %p338, %p339
      %p341 = scmp.ne.s32.totalorder %s333, %s336
      %p342 = scmp.eq.s32.totalorder %s25, 0
      %p343 = por %p341, %p342
      %p344 = scmp.ne.s32.totalorder %s333, %s336
      %p345 = scmp.eq.s32.totalorder %s30, 1
      %p346 = por %p344, %p345
      %p347 = scmp.ne.s32.totalorder %s336, %s337
      %p348 = scmp.eq.s32.totalorder %s30, 0
      %p349 = por %p347, %p348
      %p350 = scmp.ne.s32.totalorder %s336, %s337
      %p351 = scmp.eq.s32.totalorder %s31, 1
      %p352 = por %p350, %p351
      %p354 = scmp.ne.s32.totalorder %s337, %s353
      %p355 = scmp.eq.s32.totalorder %s31, 0
      %p356 = por %p354, %p355
      %s357 = ssub.s32 %s33, %s40
      %p358 = scmp.eq.s32.totalorder %s357, 0
      %s360 = sadd.s32 %s359, 1
      %s361 = scalar_select %p358, %s359, %s360
      %p364 = pneg %p358
      %p365 = scmp.eq.s32.totalorder %s25, 1
      %p366 = por %p364, %p365
      %p367 = scmp.ne.s32.totalorder %s359, %s362
      %p368 = scmp.eq.s32.totalorder %s25, 0
      %p369 = por %p367, %p368
      %p370 = scmp.ne.s32.totalorder %s359, %s362
      %p371 = scmp.eq.s32.totalorder %s30, 1
      %p372 = por %p370, %p371
      %p373 = scmp.ne.s32.totalorder %s362, %s363
      %p374 = scmp.eq.s32.totalorder %s30, 0
      %p375 = por %p373, %p374
      %p376 = scmp.ne.s32.totalorder %s362, %s363
      %p377 = scmp.eq.s32.totalorder %s31, 1
      %p378 = por %p376, %p377
      %p380 = scmp.ne.s32.totalorder %s363, %s379
      %p381 = scmp.eq.s32.totalorder %s31, 0
      %p382 = por %p380, %p381
      %s383 = ssub.s32 %s32, %s44
      %p384 = scmp.eq.s32.totalorder %s383, 0
      %s386 = sadd.s32 %s385, 1
      %s387 = scalar_select %p384, %s385, %s386
      %p390 = pneg %p384
      %p391 = scmp.eq.s32.totalorder %s25, 1
      %p392 = por %p390, %p391
      %p393 = scmp.ne.s32.totalorder %s385, %s388
      %p394 = scmp.eq.s32.totalorder %s25, 0
      %p395 = por %p393, %p394
      %p396 = scmp.ne.s32.totalorder %s385, %s388
      %p397 = scmp.eq.s32.totalorder %s30, 1
      %p398 = por %p396, %p397
      %p399 = scmp.ne.s32.totalorder %s388, %s389
      %p400 = scmp.eq.s32.totalorder %s30, 0
      %p401 = por %p399, %p400
      %p402 = scmp.ne.s32.totalorder %s388, %s389
      %p403 = scmp.eq.s32.totalorder %s31, 1
      %p404 = por %p402, %p403
      %p406 = scmp.ne.s32.totalorder %s389, %s405
      %p407 = scmp.eq.s32.totalorder %s31, 0
      %p408 = por %p406, %p407
      %s409 = ssub.s32 %s33, %s40
      %s410 = ssub.s32 %s32, %s44
      %s411 = sor.u32 %s409, %s410
      %p412 = scmp.eq.s32.totalorder %s411, 0
      %s414 = sadd.s32 %s413, 1
      %s415 = scalar_select %p412, %s413, %s414
      %p418 = pneg %p412
      %p419 = scmp.eq.s32.totalorder %s25, 1
      %p420 = por %p418, %p419
      %p421 = scmp.ne.s32.totalorder %s413, %s416
      %p422 = scmp.eq.s32.totalorder %s25, 0
      %p423 = por %p421, %p422
      %p424 = scmp.ne.s32.totalorder %s413, %s416
      %p425 = scmp.eq.s32.totalorder %s30, 1
      %p426 = por %p424, %p425
      %p427 = scmp.ne.s32.totalorder %s416, %s417
      %p428 = scmp.eq.s32.totalorder %s30, 0
      %p429 = por %p427, %p428
      %p430 = scmp.ne.s32.totalorder %s416, %s417
      %p431 = scmp.eq.s32.totalorder %s31, 1
      %p432 = por %p430, %p431
      %p434 = scmp.ne.s32.totalorder %s417, %s433
      %p435 = scmp.eq.s32.totalorder %s31, 0
      %p436 = por %p434, %p435
      %p437 = scmp.le.s32.totalorder 1, %s25
      %p438 = scmp.lt.s32.totalorder %s25, 3
      %p439 = pnand %p437, %p438
      %p440 = pneg %p439
      // Predicated region
      $region9: #{tpu_custom_call.1} parent=5 // pred_check
        _
      $region10: #{tpu_custom_call.1} parent=5 // pred_check_branch
        %442 = sbr.rel (%p439) target = $region12
      $region11: #{tpu_custom_call.1} parent=5 // pred_region
        %s443 = ssub.s32 %s25, 1
        // Predicated region
        $region13: #{tpu_custom_call.1} parent=11 // pred_check
          %p444 = pneg %p63
        $region14: #{tpu_custom_call.1} parent=11 // pred_check_branch
          %446 = sbr.rel (%p444) target = $region16
        $region15: #{tpu_custom_call.1} parent=11 // pred_region
          %s447 = smul.u32 2, %s34
          %p448 = scmp.lt.s32.totalorder %s447, 1
          %s449 = scalar_select %p448, %s447, 1
          %s450 = smul.addr %s449, 8
          %s451 = scalar_lea.vmem %s0, %s450
          %s452 = smul.u32 2, %s34
        $region16: #{tpu_custom_call.1} parent=11 // pred_fallthru
          _
      $region12: #{tpu_custom_call.1} parent=5 // pred_fallthru
        _
      %p453 = scmp.lt.s32.totalorder %s25, 2
      // Predicated region
      $region17: #{tpu_custom_call.1} parent=5 // pred_check
        %p454 = pneg %p453
      $region18: #{tpu_custom_call.1} parent=5 // pred_check_branch
        %456 = sbr.rel (%p454) target = $region20
      $region19: #{tpu_custom_call.1} parent=5 // pred_region
        // Predicated region
        $region21: #{tpu_custom_call.1} parent=19 // pred_check
          %p457 = pneg %p83
        $region22: #{tpu_custom_call.1} parent=19 // pred_check_branch
          %459 = sbr.rel (%p457) target = $region24
        $region23: #{tpu_custom_call.1} parent=19 // pred_region
          %p460 = scmp.lt.s32.totalorder %s33, 1
          %s461 = scalar_select %p460, %s33, 1
          %s462 = scalar_lea.vmem %s1, %s461
        $region24: #{tpu_custom_call.1} parent=19 // pred_fallthru
          _
        // Predicated region
        $region25: #{tpu_custom_call.1} parent=19 // pred_check
          %p463 = pneg %p109
        $region26: #{tpu_custom_call.1} parent=19 // pred_check_branch
          %465 = sbr.rel (%p463) target = $region28
        $region27: #{tpu_custom_call.1} parent=19 // pred_region
          %p466 = scmp.lt.s32.totalorder %s33, 1
          %s467 = scalar_select %p466, %s33, 1
          %s468 = scalar_lea.vmem %s2, %s467
        $region28: #{tpu_custom_call.1} parent=19 // pred_fallthru
          _
        // Predicated region
        $region29: #{tpu_custom_call.1} parent=19 // pred_check
          %p469 = pneg %p135
        $region30: #{tpu_custom_call.1} parent=19 // pred_check_branch
          %471 = sbr.rel (%p469) target = $region32
        $region31: #{tpu_custom_call.1} parent=19 // pred_region
          %p472 = scmp.lt.s32.totalorder %s33, 1
          %s473 = scalar_select %p472, %s33, 1
          %s474 = smul.addr %s473, 16
          %s475 = smul.addr %s474, 4
          %s476 = scalar_lea.vmem %s3, %s475
        $region32: #{tpu_custom_call.1} parent=19 // pred_fallthru
          _
        // Predicated region
        $region33: #{tpu_custom_call.1} parent=19 // pred_check
          %p477 = pneg %p161
        $region34: #{tpu_custom_call.1} parent=19 // pred_check_branch
          %479 = sbr.rel (%p477) target = $region36
        $region35: #{tpu_custom_call.1} parent=19 // pred_region
          %p480 = scmp.lt.s32.totalorder %s33, 1
          %s481 = scalar_select %p480, %s33, 1
          %s482 = smul.addr %s481, 4
          %s483 = scalar_lea.vmem %s4, %s482
        $region36: #{tpu_custom_call.1} parent=19 // pred_fallthru
          _
        // Predicated region
        $region37: #{tpu_custom_call.1} parent=19 // pred_check
          %p484 = pneg %p187
        $region38: #{tpu_custom_call.1} parent=19 // pred_check_branch
          %486 = sbr.rel (%p484) target = $region40
        $region39: #{tpu_custom_call.1} parent=19 // pred_region
          %p487 = scmp.lt.s32.totalorder %s33, 1
          %s488 = scalar_select %p487, %s33, 1
          %s489 = smul.addr %s488, 4
          %s490 = smul.addr %s489, 4
          %s491 = scalar_lea.vmem %s5, %s490
        $region40: #{tpu_custom_call.1} parent=19 // pred_fallthru
          _
        // Predicated region
        $region41: #{tpu_custom_call.1} parent=19 // pred_check
          %p492 = pneg %p213
        $region42: #{tpu_custom_call.1} parent=19 // pred_check_branch
          %494 = sbr.rel (%p492) target = $region44
        $region43: #{tpu_custom_call.1} parent=19 // pred_region
          %p495 = scmp.lt.s32.totalorder %s33, 1
          %s496 = scalar_select %p495, %s33, 1
          %s497 = scalar_lea.vmem %s6, %s496
        $region44: #{tpu_custom_call.1} parent=19 // pred_fallthru
          _
        // Predicated region
        $region45: #{tpu_custom_call.1} parent=19 // pred_check
          %p498 = pneg %p239
        $region46: #{tpu_custom_call.1} parent=19 // pred_check_branch
          %500 = sbr.rel (%p498) target = $region48
        $region47: #{tpu_custom_call.1} parent=19 // pred_region
          %p501 = scmp.lt.s32.totalorder %s33, 1
          %s502 = scalar_select %p501, %s33, 1
          %s503 = scalar_lea.vmem %s7, %s502
        $region48: #{tpu_custom_call.1} parent=19 // pred_fallthru
          _
        // Predicated region
        $region49: #{tpu_custom_call.1} parent=19 // pred_check
          %p504 = pneg %p265
        $region50: #{tpu_custom_call.1} parent=19 // pred_check_branch
          %506 = sbr.rel (%p504) target = $region52
        $region51: #{tpu_custom_call.1} parent=19 // pred_region
          %p507 = scmp.lt.s32.totalorder %s33, 1
          %s508 = scalar_select %p507, %s33, 1
          %s509 = scalar_lea.vmem %s8, %s508
        $region52: #{tpu_custom_call.1} parent=19 // pred_fallthru
          _
        // Predicated region
        $region53: #{tpu_custom_call.1} parent=19 // pred_check
          %p510 = pneg %p291
        $region54: #{tpu_custom_call.1} parent=19 // pred_check_branch
          %512 = sbr.rel (%p510) target = $region56
        $region55: #{tpu_custom_call.1} parent=19 // pred_region
          %p513 = scmp.lt.s32.totalorder %s33, 1
          %s514 = scalar_select %p513, %s33, 1
          %s515 = smul.addr %s514, 4
          %s516 = smul.addr %s515, 4
          %s517 = scalar_lea.vmem %s9, %s516
        $region56: #{tpu_custom_call.1} parent=19 // pred_fallthru
          _
        // Predicated region
        $region57: #{tpu_custom_call.1} parent=19 // pred_check
          %p518 = pneg %p317
        $region58: #{tpu_custom_call.1} parent=19 // pred_check_branch
          %520 = sbr.rel (%p518) target = $region60
        $region59: #{tpu_custom_call.1} parent=19 // pred_region
          %p521 = scmp.lt.s32.totalorder %s33, 1
          %s522 = scalar_select %p521, %s33, 1
          %s523 = scalar_lea.vmem %s10, %s522
        $region60: #{tpu_custom_call.1} parent=19 // pred_fallthru
          _
        // Predicated region
        $region61: #{tpu_custom_call.1} parent=19 // pred_check
          %p524 = pneg %p343
        $region62: #{tpu_custom_call.1} parent=19 // pred_check_branch
          %526 = sbr.rel (%p524) target = $region64
        $region63: #{tpu_custom_call.1} parent=19 // pred_region
          %p527 = scmp.lt.s32.totalorder %s33, 1
          %s528 = scalar_select %p527, %s33, 1
          %s529 = smul.addr %s528, 8
          %s530 = smul.addr %s529, 4
          %s531 = scalar_lea.vmem %s11, %s530
        $region64: #{tpu_custom_call.1} parent=19 // pred_fallthru
          _
        // Predicated region
        $region65: #{tpu_custom_call.1} parent=19 // pred_check
          %p532 = pneg %p369
        $region66: #{tpu_custom_call.1} parent=19 // pred_check_branch
          %534 = sbr.rel (%p532) target = $region68
        $region67: #{tpu_custom_call.1} parent=19 // pred_region
          %p535 = scmp.lt.s32.totalorder %s33, 1
          %s536 = scalar_select %p535, %s33, 1
          %s537 = scalar_lea.vmem %s12, %s536
        $region68: #{tpu_custom_call.1} parent=19 // pred_fallthru
          _
      $region20: #{tpu_custom_call.1} parent=5 // pred_fallthru
        _
      %p538 = scmp.le.s32.totalorder 1, %s25
      %p539 = scmp.lt.s32.totalorder %s25, 3
      %p540 = pnand %p538, %p539
      %p541 = pneg %p540
      // Predicated region
      $region69: #{tpu_custom_call.1} parent=5 // pred_check
        _
      $region70: #{tpu_custom_call.1} parent=5 // pred_check_branch
        %543 = sbr.rel (%p540) target = $region72
      $region71: #{tpu_custom_call.1} parent=5 // pred_region
        %s544 = ssub.s32 %s25, 1
        %s545 = smul.u32 2, %s34
        %p546 = scmp.lt.s32.totalorder %s545, 1
        %s547 = scalar_select %p546, %s545, 1
        %s548 = smul.addr %s547, 8
        %s549 = scalar_lea.vmem %s0, %s548
        %p550 = pneg %p63
        %p551 = pneg %p60
        %p552 = scmp.lt.s32.totalorder %s35, 1
        %s553 = scalar_select %p552, %s35, 1
        %s554 = scalar_lea.vmem %s1, %s553
        %p555 = pneg %p89
        %p556 = pneg %p86
        %p557 = scmp.lt.s32.totalorder %s35, 1
        %s558 = scalar_select %p557, %s35, 1
        %s559 = scalar_lea.vmem %s2, %s558
        %p560 = pneg %p115
        %p561 = pneg %p112
        %p562 = scmp.lt.s32.totalorder %s35, 1
        %s563 = scalar_select %p562, %s35, 1
        %s564 = smul.addr %s563, 16
        %s565 = smul.addr %s564, 4
        %s566 = scalar_lea.vmem %s3, %s565
        %p567 = pneg %p141
        %p568 = pneg %p138
        %p569 = scmp.lt.s32.totalorder %s35, 1
        %s570 = scalar_select %p569, %s35, 1
        %s571 = smul.addr %s570, 4
        %s572 = scalar_lea.vmem %s4, %s571
        %p573 = pneg %p167
        %p574 = pneg %p164
        %p575 = scmp.lt.s32.totalorder %s35, 1
        %s576 = scalar_select %p575, %s35, 1
        %s577 = smul.addr %s576, 4
        %s578 = smul.addr %s577, 4
        %s579 = scalar_lea.vmem %s5, %s578
        %p580 = pneg %p193
        %p581 = pneg %p190
        %p582 = scmp.lt.s32.totalorder %s35, 1
        %s583 = scalar_select %p582, %s35, 1
        %s584 = scalar_lea.vmem %s6, %s583
        %p585 = pneg %p219
        %p586 = pneg %p216
        %p587 = scmp.lt.s32.totalorder %s35, 1
        %s588 = scalar_select %p587, %s35, 1
        %s589 = scalar_lea.vmem %s7, %s588
        %p590 = pneg %p245
        %p591 = pneg %p242
        %p592 = scmp.lt.s32.totalorder %s35, 1
        %s593 = scalar_select %p592, %s35, 1
        %s594 = scalar_lea.vmem %s8, %s593
        %p595 = pneg %p271
        %p596 = pneg %p268
        %p597 = scmp.lt.s32.totalorder %s35, 1
        %s598 = scalar_select %p597, %s35, 1
        %s599 = smul.addr %s598, 4
        %s600 = smul.addr %s599, 4
        %s601 = scalar_lea.vmem %s9, %s600
        %p602 = pneg %p297
        %p603 = pneg %p294
        %p604 = scmp.lt.s32.totalorder %s35, 1
        %s605 = scalar_select %p604, %s35, 1
        %s606 = scalar_lea.vmem %s10, %s605
        %p607 = pneg %p323
        %p608 = pneg %p320
        %p609 = scmp.lt.s32.totalorder %s35, 1
        %s610 = scalar_select %p609, %s35, 1
        %s611 = smul.addr %s610, 8
        %s612 = smul.addr %s611, 4
        %s613 = scalar_lea.vmem %s11, %s612
        %p614 = pneg %p349
        %p615 = pneg %p346
        %p616 = scmp.lt.s32.totalorder %s35, 1
        %s617 = scalar_select %p616, %s35, 1
        %s618 = scalar_lea.vmem %s12, %s617
        %p619 = pneg %p375
        %p620 = pneg %p372
        %p621 = pneg %p401
        %p622 = pneg %p398
        %p623 = pneg %p429
        %p624 = pneg %p426
        %s625 = sand.u32 %s416, 1
        %s626 = scalar_lea.sflag [#allocation6], %s625
        %s627 = sand.u32 %s416, 1
        %s628 = smul.addr %s627, 8
        %s629 = scalar_lea.vmem [#allocation5], %s628
        %s630 = smul.u32 2, %s34
        %p631 = scmp.lt.s32.totalorder %s630, 1
        %s632 = scalar_select %p631, %s630, 1
        %s633 = smul.addr %s632, 8
        %s634 = scalar_lea.vmem %s0, %s633
        %s635 = smul.u32 2, %s34
        %p636 = scmp.lt.s32.totalorder %s35, 1
        %s637 = scalar_select %p636, %s35, 1
        %s638 = scalar_lea.vmem %s1, %s637
        %p639 = scmp.lt.s32.totalorder %s35, 1
        %s640 = scalar_select %p639, %s35, 1
        %s641 = scalar_lea.vmem %s2, %s640
        %p642 = scmp.lt.s32.totalorder %s35, 1
        %s643 = scalar_select %p642, %s35, 1
        %s644 = smul.addr %s643, 16
        %s645 = smul.addr %s644, 4
        %s646 = scalar_lea.vmem %s3, %s645
        %p647 = scmp.lt.s32.totalorder %s35, 1
        %s648 = scalar_select %p647, %s35, 1
        %s649 = smul.addr %s648, 4
        %s650 = scalar_lea.vmem %s4, %s649
        %p651 = scmp.lt.s32.totalorder %s35, 1
        %s652 = scalar_select %p651, %s35, 1
        %s653 = smul.addr %s652, 4
        %s654 = smul.addr %s653, 4
        %s655 = scalar_lea.vmem %s5, %s654
        %p656 = scmp.lt.s32.totalorder %s35, 1
        %s657 = scalar_select %p656, %s35, 1
        %s658 = scalar_lea.vmem %s6, %s657
        %p659 = scmp.lt.s32.totalorder %s35, 1
        %s660 = scalar_select %p659, %s35, 1
        %s661 = scalar_lea.vmem %s7, %s660
        %p662 = scmp.lt.s32.totalorder %s35, 1
        %s663 = scalar_select %p662, %s35, 1
        %s664 = scalar_lea.vmem %s8, %s663
        %p665 = scmp.lt.s32.totalorder %s35, 1
        %s666 = scalar_select %p665, %s35, 1
        %s667 = smul.addr %s666, 4
        %s668 = smul.addr %s667, 4
        %s669 = scalar_lea.vmem %s9, %s668
        %p670 = scmp.lt.s32.totalorder %s35, 1
        %s671 = scalar_select %p670, %s35, 1
        %s672 = scalar_lea.vmem %s10, %s671
        %p673 = scmp.lt.s32.totalorder %s35, 1
        %s674 = scalar_select %p673, %s35, 1
        %s675 = smul.addr %s674, 8
        %s676 = smul.addr %s675, 4
        %s677 = scalar_lea.vmem %s11, %s676
        %p678 = scmp.lt.s32.totalorder %s35, 1
        %s679 = scalar_select %p678, %s35, 1
        %s680 = scalar_lea.vmem %s12, %s679
        %s681 = smul.u32 2, %s34
        %s682 = smul.u32 2, %s34
        %p684 = scmp.eq.s32.totalorder %s35, 0
        // Predicated region
        $region73: #{tpu_custom_call.1} parent=71 // pred_check
          %p685 = pneg %p684
        $region74: #{tpu_custom_call.1} parent=71 // pred_check_branch
          %687 = sbr.rel (%p685) target = $region76
        $region75: #{tpu_custom_call.1} parent=71 // pred_region
          %v688 = vld [vmem:[%s634] sm:$0xff]
          %v689 = vld [vmem:[%s634 + $0x8] sm:$0xff]
          %vm690 = vcmask 261120
          %691 = vst.msk [vmem:[#allocation2] sm:$0xff] %vm690, %v688
          %692 = vst.msk [vmem:[#allocation2 + $0x8] sm:$0xff] %vm690, %v689
        $region76: #{tpu_custom_call.1} parent=71 // pred_fallthru
          _
        %v693 = vld [vmem:[#allocation2] sm:$0xff]
        %v694 = vld [vmem:[#allocation2 + $0x8] sm:$0xff]
        %v695 = vld [vmem:[%s638] sm:$0x1]
        %v696 = vld [vmem:[%s641] sm:$0x1]
        %vm697 = vcmask 261120
        %v698 = vsel %vm697, %v693, 0.0
        %699 = vadd.xlane.f32.xlu0 %v698
        %v700 = vpop.xlane.xlu0 %699
        %v701 = vsel %vm697, %v694, 0.0
        %702 = vadd.xlane.f32.xlu0 %v701
        %v703 = vpop.xlane.xlu0 %702
        %v704 = vrcp.pop 32.0
        %v705 = vmul.f32 %v700, %v704
        %v706 = vmul.f32 %v703, %v704
        %v707 = vsub.f32 %v693, %v705
        %v708 = vsub.f32 %v694, %v706
        %v709 = vmul.f32 %v707, %v707
        %v710 = vmul.f32 %v708, %v708
        %v711 = vsel %vm697, %v709, 0.0
        %712 = vadd.xlane.f32.xlu0 %v711
        %v713 = vpop.xlane.xlu0 %712
        %v714 = vsel %vm697, %v710, 0.0
        %715 = vadd.xlane.f32.xlu0 %v714
        %v716 = vpop.xlane.xlu0 %715
        %v717 = vmul.f32 %v713, %v704
        %v718 = vmul.f32 %v716, %v704
        %v719 = vadd.f32 %v717, 1e-05
        %v720 = vadd.f32 %v718, 1e-05
        %v721 = vrsqrt.pop %v719
        %v722 = vrsqrt.pop %v720
        %v723 = vmul.f32 %v707, %v721
        %v724 = vmul.f32 %v708, %v722
        %v726 = vlaneseq
        %v727 = vshrl.u32 %v726, 7
        %v728 = vsub.s32 0, %v727
        %v729 = vrot.slane %v695, %v728
        %v731 = vmul.f32 %v723, %v729
        %v732 = vmul.f32 %v724, %v729
        %v734 = vlaneseq
        %v735 = vshrl.u32 %v734, 7
        %v736 = vsub.s32 0, %v735
        %v737 = vrot.slane %v696, %v736
        %v739 = vadd.f32 %v731, %v737
        %v740 = vadd.f32 %v732, %v737
        %v741 = vpack.c.bf16 %v740, %v739
        %v742 = vld [vmem:[%s646] sm:$0xf]
        %v743 = vld [vmem:[%s646 + $0x4] sm:$0xf]
        %v744 = vld [vmem:[%s646 + $0x8] sm:$0xf]
        %v745 = vld [vmem:[%s646 + $0xc] sm:$0xf]
        %v746 = vld [vmem:[%s650] sm:$0x1]
        %v748 = vlaneseq
        %v749 = vshrl.u32 %v748, 7
        %v750 = vsub.s32 0, %v749
        %v751 = vrot.slane %v746, %v750
        %v757 = vunpack.c.l.b16 %v742
        %v758 = vunpack.c.l.b16 %v743
        %v759 = vunpack.c.l.b16 %v744
        %v760 = vunpack.c.l.b16 %v745
        %v761 = vpack.c.b16 %v758, %v757
        %v762 = vpack.c.b16 %v760, %v759
        %v766 = vsel %vm697, %v741, 0
        %768 = vmatprep.subr.bf16.mxu0 0
        %769 = vmatpush1.bf16.msra.mxu0 %v761
        %770 = vmatprep.subr.bf16.mxu0 0
        %771 = vmatpush1.bf16.msra.mxu0 %v762
        %772 = vmatprep.subr.bf16.mxu0 0
        %773 = vmatpush1.bf16.msra.mxu0 0
        %774 = vmatprep.subr.bf16.mxu0 0
        %775 = vmatpush1.bf16.msra.mxu0 0
        %776 = vmatprep.subr.bf16.mxu0 0
        %777 = vmatpush1.bf16.msra.mxu0 0
        %778 = vmatprep.subr.bf16.mxu0 0
        %779 = vmatpush1.bf16.msra.mxu0 0
        %780 = vmatprep.subr.bf16.mxu0 0
        %781 = vmatpush1.bf16.msra.mxu0 0
        %782 = vmatprep.subr.bf16.mxu0 0
        %783 = vmatpush1.bf16.msra.mxu0 0
        %784 = vmatprep.subr.bf16.mxu0 0
        %785 = vmatpush1.bf16.msra.mxu0 0
        %786 = vmatprep.subr.bf16.mxu0 0
        %787 = vmatpush1.bf16.msra.mxu0 0
        %788 = vmatprep.subr.bf16.mxu0 0
        %789 = vmatpush1.bf16.msra.mxu0 0
        %790 = vmatprep.subr.bf16.mxu0 0
        %791 = vmatpush1.bf16.msra.mxu0 0
        %792 = vmatprep.subr.bf16.mxu0 0
        %793 = vmatpush1.bf16.msra.mxu0 0
        %794 = vmatprep.subr.bf16.mxu0 0
        %795 = vmatpush1.bf16.msra.mxu0 0
        %796 = vmatprep.subr.bf16.mxu0 0
        %797 = vmatpush1.bf16.msra.mxu0 0
        %798 = vmatprep.subr.bf16.mxu0 0
        %799 = vmatpush1.bf16.msra.mxu0 0
        %800 = vmatprep.mubr.bf16.mxu0 0
        %801 = vmatmul.mubr.bf16.gmra.mrb[0].mxu0 %v766
        %v802 = vpop.f32.mrb[0].mxu0
        %v803 = vadd.f32 %v751, %v802
        %v804 = vpop.f32.mrb[0].mxu0
        %v805 = vpop.f32.mrb[0].mxu0
        %v806 = vadd.f32 %v751, %v805
        %v807 = vpop.f32.mrb[0].mxu0
        %808 = vdwg.mxu0
        %v809 = vmul.f32 %v803, 0.35355338
        %v810 = vmul.f32 %v806, 0.35355338
        %v811 = vpack.c.bf16 %v809, %v809
        %v812 = vpack.c.bf16 %v810, %v810
        %v813 = vpack.c.bf16 %v803, %v803
        %v814 = vpack.c.bf16 %v806, %v806
        %816 = vrot.lane.b32.xlu0 %v813, 120
        %v817 = vpop.permute.xlu0 %816
        %vm818 = vcmask 64512
        %v820 = vsel %vm818, %v811, 0
        %v823 = vsel %vm818, %v817, 0
        %825 = vmatprep.subr.bf16.mxu0 0
        %826 = vmatpush1.bf16.xpose.msra.mxu0 %v823
        %827 = vmatprep.subr.bf16.mxu0 0
        %828 = vmatpush1.bf16.xpose.msra.mxu0 0
        %829 = vmatprep.subr.bf16.mxu0 0
        %830 = vmatpush1.bf16.xpose.msra.mxu0 0
        %831 = vmatprep.subr.bf16.mxu0 0
        %832 = vmatpush1.bf16.xpose.msra.mxu0 0
        %833 = vmatprep.subr.bf16.mxu0 0
        %834 = vmatpush1.bf16.xpose.msra.mxu0 0
        %835 = vmatprep.subr.bf16.mxu0 0
        %836 = vmatpush1.bf16.xpose.msra.mxu0 0
        %837 = vmatprep.subr.bf16.mxu0 0
        %838 = vmatpush1.bf16.xpose.msra.mxu0 0
        %839 = vmatprep.subr.bf16.mxu0 0
        %840 = vmatpush1.bf16.xpose.msra.mxu0 0
        %841 = vmatprep.subr.bf16.mxu0 0
        %842 = vmatpush1.bf16.xpose.msra.mxu0 0
        %843 = vmatprep.subr.bf16.mxu0 0
        %844 = vmatpush1.bf16.xpose.msra.mxu0 0
        %845 = vmatprep.subr.bf16.mxu0 0
        %846 = vmatpush1.bf16.xpose.msra.mxu0 0
        %847 = vmatprep.subr.bf16.mxu0 0
        %848 = vmatpush1.bf16.xpose.msra.mxu0 0
        %849 = vmatprep.subr.bf16.mxu0 0
        %850 = vmatpush1.bf16.xpose.msra.mxu0 0
        %851 = vmatprep.subr.bf16.mxu0 0
        %852 = vmatpush1.bf16.xpose.msra.mxu0 0
        %853 = vmatprep.subr.bf16.mxu0 0
        %854 = vmatpush1.bf16.xpose.msra.mxu0 0
        %855 = vmatprep.subr.bf16.mxu0 0
        %856 = vmatpush1.bf16.xpose.msra.mxu0 0
        %857 = vmatprep.mubr.bf16.mxu0 0
        %858 = vmatmul.mubr.bf16.gmra.mrb[0].mxu0 %v820
        %v859 = vpop.f32.mrb[0].mxu0
        %v860 = vadd.f32 0.0, %v859
        %v861 = vpop.f32.mrb[0].mxu0
        %v862 = vpop.f32.mrb[0].mxu0
        %v863 = vpop.f32.mrb[0].mxu0
        %864 = vdwg.mxu0
        %866 = vrot.lane.b32.xlu0 %v814, 120
        %v867 = vpop.permute.xlu0 %866
        %v869 = vsel %vm818, %v812, 0
        %v872 = vsel %vm818, %v867, 0
        %874 = vmatprep.subr.bf16.mxu0 0
        %875 = vmatpush1.bf16.xpose.msra.mxu0 %v872
        %876 = vmatprep.subr.bf16.mxu0 0
        %877 = vmatpush1.bf16.xpose.msra.mxu0 0
        %878 = vmatprep.subr.bf16.mxu0 0
        %879 = vmatpush1.bf16.xpose.msra.mxu0 0
        %880 = vmatprep.subr.bf16.mxu0 0
        %881 = vmatpush1.bf16.xpose.msra.mxu0 0
        %882 = vmatprep.subr.bf16.mxu0 0
        %883 = vmatpush1.bf16.xpose.msra.mxu0 0
        %884 = vmatprep.subr.bf16.mxu0 0
        %885 = vmatpush1.bf16.xpose.msra.mxu0 0
        %886 = vmatprep.subr.bf16.mxu0 0
        %887 = vmatpush1.bf16.xpose.msra.mxu0 0
        %888 = vmatprep.subr.bf16.mxu0 0
        %889 = vmatpush1.bf16.xpose.msra.mxu0 0
        %890 = vmatprep.subr.bf16.mxu0 0
        %891 = vmatpush1.bf16.xpose.msra.mxu0 0
        %892 = vmatprep.subr.bf16.mxu0 0
        %893 = vmatpush1.bf16.xpose.msra.mxu0 0
        %894 = vmatprep.subr.bf16.mxu0 0
        %895 = vmatpush1.bf16.xpose.msra.mxu0 0
        %896 = vmatprep.subr.bf16.mxu0 0
        %897 = vmatpush1.bf16.xpose.msra.mxu0 0
        %898 = vmatprep.subr.bf16.mxu0 0
        %899 = vmatpush1.bf16.xpose.msra.mxu0 0
        %900 = vmatprep.subr.bf16.mxu0 0
        %901 = vmatpush1.bf16.xpose.msra.mxu0 0
        %902 = vmatprep.subr.bf16.mxu0 0
        %903 = vmatpush1.bf16.xpose.msra.mxu0 0
        %904 = vmatprep.subr.bf16.mxu0 0
        %905 = vmatpush1.bf16.xpose.msra.mxu0 0
        %906 = vmatprep.mubr.bf16.mxu0 0
        %907 = vmatmul.mubr.bf16.gmra.mrb[0].mxu0 %v869
        %v908 = vpop.f32.mrb[0].mxu0
        %v909 = vadd.f32 0.0, %v908
        %v910 = vpop.f32.mrb[0].mxu0
        %v911 = vpop.f32.mrb[0].mxu0
        %v912 = vpop.f32.mrb[0].mxu0
        %913 = vdwg.mxu0
        %v914 = vsel %vm818, %v860, -inf
        %915 = vmax.xlane.f32.xlu0 %v914
        %v916 = vpop.xlane.xlu0 %915
        %v917 = vsel %vm818, %v909, -inf
        %918 = vmax.xlane.f32.xlu0 %v917
        %v919 = vpop.xlane.xlu0 %918
        %v920 = vsub.f32 %v860, %v916
        %v921 = vsub.f32 %v909, %v919
        %v922 = vmul.f32 %v920, 1.442695
        %v923 = vpow.pop %v922
        %v924 = vmul.f32 %v921, 1.442695
        %v925 = vpow.pop %v924
        %v926 = vsel %vm818, %v923, 0.0
        %927 = vadd.xlane.f32.xlu0 %v926
        %v928 = vpop.xlane.xlu0 %927
        %v929 = vsel %vm818, %v925, 0.0
        %930 = vadd.xlane.f32.xlu0 %v929
        %v931 = vpop.xlane.xlu0 %930
        %v932 = vrcp.pop %v928
        %v933 = vrcp.pop %v931
        %v934 = vmul.f32 %v923, %v932
        %v935 = vmul.f32 %v925, %v933
        %v936 = vadd.f32 %v934, 0.0
        %v937 = vadd.f32 %v935, 0.0
        %v938 = vpack.c.bf16 %v934, %v934
        %v939 = vpack.c.bf16 %v935, %v935
        %940 = vrot.lane.b32.xlu0 %v813, 112
        %v941 = vpop.permute.xlu0 %940
        %v943 = vsel %vm818, %v938, 0
        %vm945 = vcmask 1043456
        %v947 = vsel %vm945, %v941, 0
        %949 = vmatprep.subr.bf16.mxu0 0
        %950 = vmatpush1.bf16.msra.mxu0 %v947
        %951 = vmatprep.subr.bf16.mxu0 0
        %952 = vmatpush1.bf16.msra.mxu0 0
        %953 = vmatprep.subr.bf16.mxu0 0
        %954 = vmatpush1.bf16.msra.mxu0 0
        %955 = vmatprep.subr.bf16.mxu0 0
        %956 = vmatpush1.bf16.msra.mxu0 0
        %957 = vmatprep.subr.bf16.mxu0 0
        %958 = vmatpush1.bf16.msra.mxu0 0
        %959 = vmatprep.subr.bf16.mxu0 0
        %960 = vmatpush1.bf16.msra.mxu0 0
        %961 = vmatprep.subr.bf16.mxu0 0
        %962 = vmatpush1.bf16.msra.mxu0 0
        %963 = vmatprep.subr.bf16.mxu0 0
        %964 = vmatpush1.bf16.msra.mxu0 0
        %965 = vmatprep.subr.bf16.mxu0 0
        %966 = vmatpush1.bf16.msra.mxu0 0
        %967 = vmatprep.subr.bf16.mxu0 0
        %968 = vmatpush1.bf16.msra.mxu0 0
        %969 = vmatprep.subr.bf16.mxu0 0
        %970 = vmatpush1.bf16.msra.mxu0 0
        %971 = vmatprep.subr.bf16.mxu0 0
        %972 = vmatpush1.bf16.msra.mxu0 0
        %973 = vmatprep.subr.bf16.mxu0 0
        %974 = vmatpush1.bf16.msra.mxu0 0
        %975 = vmatprep.subr.bf16.mxu0 0
        %976 = vmatpush1.bf16.msra.mxu0 0
        %977 = vmatprep.subr.bf16.mxu0 0
        %978 = vmatpush1.bf16.msra.mxu0 0
        %979 = vmatprep.subr.bf16.mxu0 0
        %980 = vmatpush1.bf16.msra.mxu0 0
        %981 = vmatprep.mubr.bf16.mxu0 0
        %982 = vmatmul.mubr.bf16.gmra.mrb[0].mxu0 %v943
        %v983 = vpop.f32.mrb[0].mxu0
        %v984 = vadd.f32 0.0, %v983
        %v985 = vpop.f32.mrb[0].mxu0
        %v986 = vpop.f32.mrb[0].mxu0
        %v987 = vpop.f32.mrb[0].mxu0
        %988 = vdwg.mxu0
        %989 = vrot.lane.b32.xlu0 %v814, 112
        %v990 = vpop.permute.xlu0 %989
        %v992 = vsel %vm818, %v939, 0
        %v995 = vsel %vm945, %v990, 0
        %997 = vmatprep.subr.bf16.mxu0 0
        %998 = vmatpush1.bf16.msra.mxu0 %v995
        %999 = vmatprep.subr.bf16.mxu0 0
        %1000 = vmatpush1.bf16.msra.mxu0 0
        %1001 = vmatprep.subr.bf16.mxu0 0
        %1002 = vmatpush1.bf16.msra.mxu0 0
        %1003 = vmatprep.subr.bf16.mxu0 0
        %1004 = vmatpush1.bf16.msra.mxu0 0
        %1005 = vmatprep.subr.bf16.mxu0 0
        %1006 = vmatpush1.bf16.msra.mxu0 0
        %1007 = vmatprep.subr.bf16.mxu0 0
        %1008 = vmatpush1.bf16.msra.mxu0 0
        %1009 = vmatprep.subr.bf16.mxu0 0
        %1010 = vmatpush1.bf16.msra.mxu0 0
        %1011 = vmatprep.subr.bf16.mxu0 0
        %1012 = vmatpush1.bf16.msra.mxu0 0
        %1013 = vmatprep.subr.bf16.mxu0 0
        %1014 = vmatpush1.bf16.msra.mxu0 0
        %1015 = vmatprep.subr.bf16.mxu0 0
        %1016 = vmatpush1.bf16.msra.mxu0 0
        %1017 = vmatprep.subr.bf16.mxu0 0
        %1018 = vmatpush1.bf16.msra.mxu0 0
        %1019 = vmatprep.subr.bf16.mxu0 0
        %1020 = vmatpush1.bf16.msra.mxu0 0
        %1021 = vmatprep.subr.bf16.mxu0 0
        %1022 = vmatpush1.bf16.msra.mxu0 0
        %1023 = vmatprep.subr.bf16.mxu0 0
        %1024 = vmatpush1.bf16.msra.mxu0 0
        %1025 = vmatprep.subr.bf16.mxu0 0
        %1026 = vmatpush1.bf16.msra.mxu0 0
        %1027 = vmatprep.subr.bf16.mxu0 0
        %1028 = vmatpush1.bf16.msra.mxu0 0
        %1029 = vmatprep.mubr.bf16.mxu0 0
        %1030 = vmatmul.mubr.bf16.gmra.mrb[0].mxu0 %v992
        %v1031 = vpop.f32.mrb[0].mxu0
        %v1032 = vadd.f32 0.0, %v1031
        %v1033 = vpop.f32.mrb[0].mxu0
        %v1034 = vpop.f32.mrb[0].mxu0
        %v1035 = vpop.f32.mrb[0].mxu0
        %1036 = vdwg.mxu0
        %v1037 = vpack.c.bf16 %v1032, %v984
        %s1038 = scalar_lea.vmem %s646, 16
        %v1039 = vld [vmem:[%s1038] sm:$0xf]
        %v1040 = vld [vmem:[%s1038 + $0x4] sm:$0xf]
        %v1041 = vld [vmem:[%s1038 + $0x8] sm:$0xf]
        %v1042 = vld [vmem:[%s1038 + $0xc] sm:$0xf]
        %s1043 = scalar_lea.vmem %s650, 1
        %v1044 = vld [vmem:[%s1043] sm:$0x1]
        %v1046 = vlaneseq
        %v1047 = vshrl.u32 %v1046, 7
        %v1048 = vsub.s32 0, %v1047
        %v1049 = vrot.slane %v1044, %v1048
        %v1055 = vunpack.c.l.b16 %v1039
        %v1056 = vunpack.c.l.b16 %v1040
        %v1057 = vunpack.c.l.b16 %v1041
        %v1058 = vunpack.c.l.b16 %v1042
        %v1059 = vpack.c.b16 %v1056, %v1055
        %v1060 = vpack.c.b16 %v1058, %v1057
        %1063 = vmatprep.subr.bf16.mxu0 0
        %1064 = vmatpush1.bf16.msra.mxu0 %v1059
        %1065 = vmatprep.subr.bf16.mxu0 0
        %1066 = vmatpush1.bf16.msra.mxu0 %v1060
        %1067 = vmatprep.subr.bf16.mxu0 0
        %1068 = vmatpush1.bf16.msra.mxu0 0
        %1069 = vmatprep.subr.bf16.mxu0 0
        %1070 = vmatpush1.bf16.msra.mxu0 0
        %1071 = vmatprep.subr.bf16.mxu0 0
        %1072 = vmatpush1.bf16.msra.mxu0 0
        %1073 = vmatprep.subr.bf16.mxu0 0
        %1074 = vmatpush1.bf16.msra.mxu0 0
        %1075 = vmatprep.subr.bf16.mxu0 0
        %1076 = vmatpush1.bf16.msra.mxu0 0
        %1077 = vmatprep.subr.bf16.mxu0 0
        %1078 = vmatpush1.bf16.msra.mxu0 0
        %1079 = vmatprep.subr.bf16.mxu0 0
        %1080 = vmatpush1.bf16.msra.mxu0 0
        %1081 = vmatprep.subr.bf16.mxu0 0
        %1082 = vmatpush1.bf16.msra.mxu0 0
        %1083 = vmatprep.subr.bf16.mxu0 0
        %1084 = vmatpush1.bf16.msra.mxu0 0
        %1085 = vmatprep.subr.bf16.mxu0 0
        %1086 = vmatpush1.bf16.msra.mxu0 0
        %1087 = vmatprep.subr.bf16.mxu0 0
        %1088 = vmatpush1.bf16.msra.mxu0 0
        %1089 = vmatprep.subr.bf16.mxu0 0
        %1090 = vmatpush1.bf16.msra.mxu0 0
        %1091 = vmatprep.subr.bf16.mxu0 0
        %1092 = vmatpush1.bf16.msra.mxu0 0
        %1093 = vmatprep.subr.bf16.mxu0 0
        %1094 = vmatpush1.bf16.msra.mxu0 0
        %1095 = vmatprep.mubr.bf16.mxu0 0
        %1096 = vmatmul.mubr.bf16.gmra.mrb[0].mxu0 %v766
        %v1097 = vpop.f32.mrb[0].mxu0
        %v1098 = vadd.f32 %v1049, %v1097
        %v1099 = vpop.f32.mrb[0].mxu0
        %v1100 = vpop.f32.mrb[0].mxu0
        %v1101 = vadd.f32 %v1049, %v1100
        %v1102 = vpop.f32.mrb[0].mxu0
        %1103 = vdwg.mxu0
        %v1104 = vmul.f32 %v1098, 0.35355338
        %v1105 = vmul.f32 %v1101, 0.35355338
        %v1106 = vpack.c.bf16 %v1104, %v1104
        %v1107 = vpack.c.bf16 %v1105, %v1105
        %v1108 = vpack.c.bf16 %v1098, %v1098
        %v1109 = vpack.c.bf16 %v1101, %v1101
        %1111 = vrot.lane.b32.xlu0 %v1108, 120
        %v1112 = vpop.permute.xlu0 %1111
        %v1114 = vsel %vm818, %v1106, 0
        %v1117 = vsel %vm818, %v1112, 0
        %1119 = vmatprep.subr.bf16.mxu0 0
        %1120 = vmatpush1.bf16.xpose.msra.mxu0 %v1117
        %1121 = vmatprep.subr.bf16.mxu0 0
        %1122 = vmatpush1.bf16.xpose.msra.mxu0 0
        %1123 = vmatprep.subr.bf16.mxu0 0
        %1124 = vmatpush1.bf16.xpose.msra.mxu0 0
        %1125 = vmatprep.subr.bf16.mxu0 0
        %1126 = vmatpush1.bf16.xpose.msra.mxu0 0
        %1127 = vmatprep.subr.bf16.mxu0 0
        %1128 = vmatpush1.bf16.xpose.msra.mxu0 0
        %1129 = vmatprep.subr.bf16.mxu0 0
        %1130 = vmatpush1.bf16.xpose.msra.mxu0 0
        %1131 = vmatprep.subr.bf16.mxu0 0
        %1132 = vmatpush1.bf16.xpose.msra.mxu0 0
        %1133 = vmatprep.subr.bf16.mxu0 0
        %1134 = vmatpush1.bf16.xpose.msra.mxu0 0
        %1135 = vmatprep.subr.bf16.mxu0 0
        %1136 = vmatpush1.bf16.xpose.msra.mxu0 0
        %1137 = vmatprep.subr.bf16.mxu0 0
        %1138 = vmatpush1.bf16.xpose.msra.mxu0 0
        %1139 = vmatprep.subr.bf16.mxu0 0
        %1140 = vmatpush1.bf16.xpose.msra.mxu0 0
        %1141 = vmatprep.subr.bf16.mxu0 0
        %1142 = vmatpush1.bf16.xpose.msra.mxu0 0
        %1143 = vmatprep.subr.bf16.mxu0 0
        %1144 = vmatpush1.bf16.xpose.msra.mxu0 0
        %1145 = vmatprep.subr.bf16.mxu0 0
        %1146 = vmatpush1.bf16.xpose.msra.mxu0 0
        %1147 = vmatprep.subr.bf16.mxu0 0
        %1148 = vmatpush1.bf16.xpose.msra.mxu0 0
        %1149 = vmatprep.subr.bf16.mxu0 0
        %1150 = vmatpush1.bf16.xpose.msra.mxu0 0
        %1151 = vmatprep.mubr.bf16.mxu0 0
        %1152 = vmatmul.mubr.bf16.gmra.mrb[0].mxu0 %v1114
        %v1153 = vpop.f32.mrb[0].mxu0
        %v1154 = vadd.f32 0.0, %v1153
        %v1155 = vpop.f32.mrb[0].mxu0
        %v1156 = vpop.f32.mrb[0].mxu0
        %v1157 = vpop.f32.mrb[0].mxu0
        %1158 = vdwg.mxu0
        %1160 = vrot.lane.b32.xlu0 %v1109, 120
        %v1161 = vpop.permute.xlu0 %1160
        %v1163 = vsel %vm818, %v1107, 0
        %v1166 = vsel %vm818, %v1161, 0
        %1168 = vmatprep.subr.bf16.mxu0 0
        %1169 = vmatpush1.bf16.xpose.msra.mxu0 %v1166
        %1170 = vmatprep.subr.bf16.mxu0 0
        %1171 = vmatpush1.bf16.xpose.msra.mxu0 0
        %1172 = vmatprep.subr.bf16.mxu0 0
        %1173 = vmatpush1.bf16.xpose.msra.mxu0 0
        %1174 = vmatprep.subr.bf16.mxu0 0
        %1175 = vmatpush1.bf16.xpose.msra.mxu0 0
        %1176 = vmatprep.subr.bf16.mxu0 0
        %1177 = vmatpush1.bf16.xpose.msra.mxu0 0
        %1178 = vmatprep.subr.bf16.mxu0 0
        %1179 = vmatpush1.bf16.xpose.msra.mxu0 0
        %1180 = vmatprep.subr.bf16.mxu0 0
        %1181 = vmatpush1.bf16.xpose.msra.mxu0 0
        %1182 = vmatprep.subr.bf16.mxu0 0
        %1183 = vmatpush1.bf16.xpose.msra.mxu0 0
        %1184 = vmatprep.subr.bf16.mxu0 0
        %1185 = vmatpush1.bf16.xpose.msra.mxu0 0
        %1186 = vmatprep.subr.bf16.mxu0 0
        %1187 = vmatpush1.bf16.xpose.msra.mxu0 0
        %1188 = vmatprep.subr.bf16.mxu0 0
        %1189 = vmatpush1.bf16.xpose.msra.mxu0 0
        %1190 = vmatprep.subr.bf16.mxu0 0
        %1191 = vmatpush1.bf16.xpose.msra.mxu0 0
        %1192 = vmatprep.subr.bf16.mxu0 0
        %1193 = vmatpush1.bf16.xpose.msra.mxu0 0
        %1194 = vmatprep.subr.bf16.mxu0 0
        %1195 = vmatpush1.bf16.xpose.msra.mxu0 0
        %1196 = vmatprep.subr.bf16.mxu0 0
        %1197 = vmatpush1.bf16.xpose.msra.mxu0 0
        %1198 = vmatprep.subr.bf16.mxu0 0
        %1199 = vmatpush1.bf16.xpose.msra.mxu0 0
        %1200 = vmatprep.mubr.bf16.mxu0 0
        %1201 = vmatmul.mubr.bf16.gmra.mrb[0].mxu0 %v1163
        %v1202 = vpop.f32.mrb[0].mxu0
        %v1203 = vadd.f32 0.0, %v1202
        %v1204 = vpop.f32.mrb[0].mxu0
        %v1205 = vpop.f32.mrb[0].mxu0
        %v1206 = vpop.f32.mrb[0].mxu0
        %1207 = vdwg.mxu0
        %v1208 = vsel %vm818, %v1154, -inf
        %1209 = vmax.xlane.f32.xlu0 %v1208
        %v1210 = vpop.xlane.xlu0 %1209
        %v1211 = vsel %vm818, %v1203, -inf
        %1212 = vmax.xlane.f32.xlu0 %v1211
        %v1213 = vpop.xlane.xlu0 %1212
        %v1214 = vsub.f32 %v1154, %v1210
        %v1215 = vsub.f32 %v1203, %v1213
        %v1216 = vmul.f32 %v1214, 1.442695
        %v1217 = vpow.pop %v1216
        %v1218 = vmul.f32 %v1215, 1.442695
        %v1219 = vpow.pop %v1218
        %v1220 = vsel %vm818, %v1217, 0.0
        %1221 = vadd.xlane.f32.xlu0 %v1220
        %v1222 = vpop.xlane.xlu0 %1221
        %v1223 = vsel %vm818, %v1219, 0.0
        %1224 = vadd.xlane.f32.xlu0 %v1223
        %v1225 = vpop.xlane.xlu0 %1224
        %v1226 = vrcp.pop %v1222
        %v1227 = vrcp.pop %v1225
        %v1228 = vmul.f32 %v1217, %v1226
        %v1229 = vmul.f32 %v1219, %v1227
        %v1230 = vadd.f32 %v936, %v1228
        %v1231 = vadd.f32 %v937, %v1229
        %v1232 = vpack.c.bf16 %v1228, %v1228
        %v1233 = vpack.c.bf16 %v1229, %v1229
        %1234 = vrot.lane.b32.xlu0 %v1108, 112
        %v1235 = vpop.permute.xlu0 %1234
        %v1237 = vsel %vm818, %v1232, 0
        %v1240 = vsel %vm945, %v1235, 0
        %1242 = vmatprep.subr.bf16.mxu0 0
        %1243 = vmatpush1.bf16.msra.mxu0 %v1240
        %1244 = vmatprep.subr.bf16.mxu0 0
        %1245 = vmatpush1.bf16.msra.mxu0 0
        %1246 = vmatprep.subr.bf16.mxu0 0
        %1247 = vmatpush1.bf16.msra.mxu0 0
        %1248 = vmatprep.subr.bf16.mxu0 0
        %1249 = vmatpush1.bf16.msra.mxu0 0
        %1250 = vmatprep.subr.bf16.mxu0 0
        %1251 = vmatpush1.bf16.msra.mxu0 0
        %1252 = vmatprep.subr.bf16.mxu0 0
        %1253 = vmatpush1.bf16.msra.mxu0 0
        %1254 = vmatprep.subr.bf16.mxu0 0
        %1255 = vmatpush1.bf16.msra.mxu0 0
        %1256 = vmatprep.subr.bf16.mxu0 0
        %1257 = vmatpush1.bf16.msra.mxu0 0
        %1258 = vmatprep.subr.bf16.mxu0 0
        %1259 = vmatpush1.bf16.msra.mxu0 0
        %1260 = vmatprep.subr.bf16.mxu0 0
        %1261 = vmatpush1.bf16.msra.mxu0 0
        %1262 = vmatprep.subr.bf16.mxu0 0
        %1263 = vmatpush1.bf16.msra.mxu0 0
        %1264 = vmatprep.subr.bf16.mxu0 0
        %1265 = vmatpush1.bf16.msra.mxu0 0
        %1266 = vmatprep.subr.bf16.mxu0 0
        %1267 = vmatpush1.bf16.msra.mxu0 0
        %1268 = vmatprep.subr.bf16.mxu0 0
        %1269 = vmatpush1.bf16.msra.mxu0 0
        %1270 = vmatprep.subr.bf16.mxu0 0
        %1271 = vmatpush1.bf16.msra.mxu0 0
        %1272 = vmatprep.subr.bf16.mxu0 0
        %1273 = vmatpush1.bf16.msra.mxu0 0
        %1274 = vmatprep.mubr.bf16.mxu0 0
        %1275 = vmatmul.mubr.bf16.gmra.mrb[0].mxu0 %v1237
        %v1276 = vpop.f32.mrb[0].mxu0
        %v1277 = vadd.f32 0.0, %v1276
        %v1278 = vpop.f32.mrb[0].mxu0
        %v1279 = vpop.f32.mrb[0].mxu0
        %v1280 = vpop.f32.mrb[0].mxu0
        %1281 = vdwg.mxu0
        %1282 = vrot.lane.b32.xlu0 %v1109, 112
        %v1283 = vpop.permute.xlu0 %1282
        %v1285 = vsel %vm818, %v1233, 0
        %v1288 = vsel %vm945, %v1283, 0
        %1290 = vmatprep.subr.bf16.mxu0 0
        %1291 = vmatpush1.bf16.msra.mxu0 %v1288
        %1292 = vmatprep.subr.bf16.mxu0 0
        %1293 = vmatpush1.bf16.msra.mxu0 0
        %1294 = vmatprep.subr.bf16.mxu0 0
        %1295 = vmatpush1.bf16.msra.mxu0 0
        %1296 = vmatprep.subr.bf16.mxu0 0
        %1297 = vmatpush1.bf16.msra.mxu0 0
        %1298 = vmatprep.subr.bf16.mxu0 0
        %1299 = vmatpush1.bf16.msra.mxu0 0
        %1300 = vmatprep.subr.bf16.mxu0 0
        %1301 = vmatpush1.bf16.msra.mxu0 0
        %1302 = vmatprep.subr.bf16.mxu0 0
        %1303 = vmatpush1.bf16.msra.mxu0 0
        %1304 = vmatprep.subr.bf16.mxu0 0
        %1305 = vmatpush1.bf16.msra.mxu0 0
        %1306 = vmatprep.subr.bf16.mxu0 0
        %1307 = vmatpush1.bf16.msra.mxu0 0
        %1308 = vmatprep.subr.bf16.mxu0 0
        %1309 = vmatpush1.bf16.msra.mxu0 0
        %1310 = vmatprep.subr.bf16.mxu0 0
        %1311 = vmatpush1.bf16.msra.mxu0 0
        %1312 = vmatprep.subr.bf16.mxu0 0
        %1313 = vmatpush1.bf16.msra.mxu0 0
        %1314 = vmatprep.subr.bf16.mxu0 0
        %1315 = vmatpush1.bf16.msra.mxu0 0
        %1316 = vmatprep.subr.bf16.mxu0 0
        %1317 = vmatpush1.bf16.msra.mxu0 0
        %1318 = vmatprep.subr.bf16.mxu0 0
        %1319 = vmatpush1.bf16.msra.mxu0 0
        %1320 = vmatprep.subr.bf16.mxu0 0
        %1321 = vmatpush1.bf16.msra.mxu0 0
        %1322 = vmatprep.mubr.bf16.mxu0 0
        %1323 = vmatmul.mubr.bf16.gmra.mrb[0].mxu0 %v1285
        %v1324 = vpop.f32.mrb[0].mxu0
        %v1325 = vadd.f32 0.0, %v1324
        %v1326 = vpop.f32.mrb[0].mxu0
        %v1327 = vpop.f32.mrb[0].mxu0
        %v1328 = vpop.f32.mrb[0].mxu0
        %1329 = vdwg.mxu0
        %v1330 = vpack.c.bf16 %v1325, %v1277
        %s1331 = scalar_lea.vmem %s646, 32
        %v1332 = vld [vmem:[%s1331] sm:$0xf]
        %v1333 = vld [vmem:[%s1331 + $0x4] sm:$0xf]
        %v1334 = vld [vmem:[%s1331 + $0x8] sm:$0xf]
        %v1335 = vld [vmem:[%s1331 + $0xc] sm:$0xf]
        %s1336 = scalar_lea.vmem %s650, 2
        %v1337 = vld [vmem:[%s1336] sm:$0x1]
        %v1339 = vlaneseq
        %v1340 = vshrl.u32 %v1339, 7
        %v1341 = vsub.s32 0, %v1340
        %v1342 = vrot.slane %v1337, %v1341
        %v1348 = vunpack.c.l.b16 %v1332
        %v1349 = vunpack.c.l.b16 %v1333
        %v1350 = vunpack.c.l.b16 %v1334
        %v1351 = vunpack.c.l.b16 %v1335
        %v1352 = vpack.c.b16 %v1349, %v1348
        %v1353 = vpack.c.b16 %v1351, %v1350
        %1356 = vmatprep.subr.bf16.mxu0 0
        %1357 = vmatpush1.bf16.msra.mxu0 %v1352
        %1358 = vmatprep.subr.bf16.mxu0 0
        %1359 = vmatpush1.bf16.msra.mxu0 %v1353
        %1360 = vmatprep.subr.bf16.mxu0 0
        %1361 = vmatpush1.bf16.msra.mxu0 0
        %1362 = vmatprep.subr.bf16.mxu0 0
        %1363 = vmatpush1.bf16.msra.mxu0 0
        %1364 = vmatprep.subr.bf16.mxu0 0
        %1365 = vmatpush1.bf16.msra.mxu0 0
        %1366 = vmatprep.subr.bf16.mxu0 0
        %1367 = vmatpush1.bf16.msra.mxu0 0
        %1368 = vmatprep.subr.bf16.mxu0 0
        %1369 = vmatpush1.bf16.msra.mxu0 0
        %1370 = vmatprep.subr.bf16.mxu0 0
        %1371 = vmatpush1.bf16.msra.mxu0 0
        %1372 = vmatprep.subr.bf16.mxu0 0
        %1373 = vmatpush1.bf16.msra.mxu0 0
        %1374 = vmatprep.subr.bf16.mxu0 0
        %1375 = vmatpush1.bf16.msra.mxu0 0
        %1376 = vmatprep.subr.bf16.mxu0 0
        %1377 = vmatpush1.bf16.msra.mxu0 0
        %1378 = vmatprep.subr.bf16.mxu0 0
        %1379 = vmatpush1.bf16.msra.mxu0 0
        %1380 = vmatprep.subr.bf16.mxu0 0
        %1381 = vmatpush1.bf16.msra.mxu0 0
        %1382 = vmatprep.subr.bf16.mxu0 0
        %1383 = vmatpush1.bf16.msra.mxu0 0
        %1384 = vmatprep.subr.bf16.mxu0 0
        %1385 = vmatpush1.bf16.msra.mxu0 0
        %1386 = vmatprep.subr.bf16.mxu0 0
        %1387 = vmatpush1.bf16.msra.mxu0 0
        %1388 = vmatprep.mubr.bf16.mxu0 0
        %1389 = vmatmul.mubr.bf16.gmra.mrb[0].mxu0 %v766
        %v1390 = vpop.f32.mrb[0].mxu0
        %v1391 = vadd.f32 %v1342, %v1390
        %v1392 = vpop.f32.mrb[0].mxu0
        %v1393 = vpop.f32.mrb[0].mxu0
        %v1394 = vadd.f32 %v1342, %v1393
        %v1395 = vpop.f32.mrb[0].mxu0
        %1396 = vdwg.mxu0
        %v1397 = vmul.f32 %v1391, 0.35355338
        %v1398 = vmul.f32 %v1394, 0.35355338
        %v1399 = vpack.c.bf16 %v1397, %v1397
        %v1400 = vpack.c.bf16 %v1398, %v1398
        %v1401 = vpack.c.bf16 %v1391, %v1391
        %v1402 = vpack.c.bf16 %v1394, %v1394
        %1404 = vrot.lane.b32.xlu0 %v1401, 120
        %v1405 = vpop.permute.xlu0 %1404
        %v1407 = vsel %vm818, %v1399, 0
        %v1410 = vsel %vm818, %v1405, 0
        %1412 = vmatprep.subr.bf16.mxu0 0
        %1413 = vmatpush1.bf16.xpose.msra.mxu0 %v1410
        %1414 = vmatprep.subr.bf16.mxu0 0
        %1415 = vmatpush1.bf16.xpose.msra.mxu0 0
        %1416 = vmatprep.subr.bf16.mxu0 0
        %1417 = vmatpush1.bf16.xpose.msra.mxu0 0
        %1418 = vmatprep.subr.bf16.mxu0 0
        %1419 = vmatpush1.bf16.xpose.msra.mxu0 0
        %1420 = vmatprep.subr.bf16.mxu0 0
        %1421 = vmatpush1.bf16.xpose.msra.mxu0 0
        %1422 = vmatprep.subr.bf16.mxu0 0
        %1423 = vmatpush1.bf16.xpose.msra.mxu0 0
        %1424 = vmatprep.subr.bf16.mxu0 0
        %1425 = vmatpush1.bf16.xpose.msra.mxu0 0
        %1426 = vmatprep.subr.bf16.mxu0 0
        %1427 = vmatpush1.bf16.xpose.msra.mxu0 0
        %1428 = vmatprep.subr.bf16.mxu0 0
        %1429 = vmatpush1.bf16.xpose.msra.mxu0 0
        %1430 = vmatprep.subr.bf16.mxu0 0
        %1431 = vmatpush1.bf16.xpose.msra.mxu0 0
        %1432 = vmatprep.subr.bf16.mxu0 0
        %1433 = vmatpush1.bf16.xpose.msra.mxu0 0
        %1434 = vmatprep.subr.bf16.mxu0 0
        %1435 = vmatpush1.bf16.xpose.msra.mxu0 0
        %1436 = vmatprep.subr.bf16.mxu0 0
        %1437 = vmatpush1.bf16.xpose.msra.mxu0 0
        %1438 = vmatprep.subr.bf16.mxu0 0
        %1439 = vmatpush1.bf16.xpose.msra.mxu0 0
        %1440 = vmatprep.subr.bf16.mxu0 0
        %1441 = vmatpush1.bf16.xpose.msra.mxu0 0
        %1442 = vmatprep.subr.bf16.mxu0 0
        %1443 = vmatpush1.bf16.xpose.msra.mxu0 0
        %1444 = vmatprep.mubr.bf16.mxu0 0
        %1445 = vmatmul.mubr.bf16.gmra.mrb[0].mxu0 %v1407
        %v1446 = vpop.f32.mrb[0].mxu0
        %v1447 = vadd.f32 0.0, %v1446
        %v1448 = vpop.f32.mrb[0].mxu0
        %v1449 = vpop.f32.mrb[0].mxu0
        %v1450 = vpop.f32.mrb[0].mxu0
        %1451 = vdwg.mxu0
        %1453 = vrot.lane.b32.xlu0 %v1402, 120
        %v1454 = vpop.permute.xlu0 %1453
        %v1456 = vsel %vm818, %v1400, 0
        %v1459 = vsel %vm818, %v1454, 0
        %1461 = vmatprep.subr.bf16.mxu0 0
        %1462 = vmatpush1.bf16.xpose.msra.mxu0 %v1459
        %1463 = vmatprep.subr.bf16.mxu0 0
        %1464 = vmatpush1.bf16.xpose.msra.mxu0 0
        %1465 = vmatprep.subr.bf16.mxu0 0
        %1466 = vmatpush1.bf16.xpose.msra.mxu0 0
        %1467 = vmatprep.subr.bf16.mxu0 0
        %1468 = vmatpush1.bf16.xpose.msra.mxu0 0
        %1469 = vmatprep.subr.bf16.mxu0 0
        %1470 = vmatpush1.bf16.xpose.msra.mxu0 0
        %1471 = vmatprep.subr.bf16.mxu0 0
        %1472 = vmatpush1.bf16.xpose.msra.mxu0 0
        %1473 = vmatprep.subr.bf16.mxu0 0
        %1474 = vmatpush1.bf16.xpose.msra.mxu0 0
        %1475 = vmatprep.subr.bf16.mxu0 0
        %1476 = vmatpush1.bf16.xpose.msra.mxu0 0
        %1477 = vmatprep.subr.bf16.mxu0 0
        %1478 = vmatpush1.bf16.xpose.msra.mxu0 0
        %1479 = vmatprep.subr.bf16.mxu0 0
        %1480 = vmatpush1.bf16.xpose.msra.mxu0 0
        %1481 = vmatprep.subr.bf16.mxu0 0
        %1482 = vmatpush1.bf16.xpose.msra.mxu0 0
        %1483 = vmatprep.subr.bf16.mxu0 0
        %1484 = vmatpush1.bf16.xpose.msra.mxu0 0
        %1485 = vmatprep.subr.bf16.mxu0 0
        %1486 = vmatpush1.bf16.xpose.msra.mxu0 0
        %1487 = vmatprep.subr.bf16.mxu0 0
        %1488 = vmatpush1.bf16.xpose.msra.mxu0 0
        %1489 = vmatprep.subr.bf16.mxu0 0
        %1490 = vmatpush1.bf16.xpose.msra.mxu0 0
        %1491 = vmatprep.subr.bf16.mxu0 0
        %1492 = vmatpush1.bf16.xpose.msra.mxu0 0
        %1493 = vmatprep.mubr.bf16.mxu0 0
        %1494 = vmatmul.mubr.bf16.gmra.mrb[0].mxu0 %v1456
        %v1495 = vpop.f32.mrb[0].mxu0
        %v1496 = vadd.f32 0.0, %v1495
        %v1497 = vpop.f32.mrb[0].mxu0
        %v1498 = vpop.f32.mrb[0].mxu0
        %v1499 = vpop.f32.mrb[0].mxu0
        %1500 = vdwg.mxu0
        %v1501 = vsel %vm818, %v1447, -inf
        %1502 = vmax.xlane.f32.xlu0 %v1501
        %v1503 = vpop.xlane.xlu0 %1502
        %v1504 = vsel %vm818, %v1496, -inf
        %1505 = vmax.xlane.f32.xlu0 %v1504
        %v1506 = vpop.xlane.xlu0 %1505
        %v1507 = vsub.f32 %v1447, %v1503
        %v1508 = vsub.f32 %v1496, %v1506
        %v1509 = vmul.f32 %v1507, 1.442695
        %v1510 = vpow.pop %v1509
        %v1511 = vmul.f32 %v1508, 1.442695
        %v1512 = vpow.pop %v1511
        %v1513 = vsel %vm818, %v1510, 0.0
        %1514 = vadd.xlane.f32.xlu0 %v1513
        %v1515 = vpop.xlane.xlu0 %1514
        %v1516 = vsel %vm818, %v1512, 0.0
        %1517 = vadd.xlane.f32.xlu0 %v1516
        %v1518 = vpop.xlane.xlu0 %1517
        %v1519 = vrcp.pop %v1515
        %v1520 = vrcp.pop %v1518
        %v1521 = vmul.f32 %v1510, %v1519
        %v1522 = vmul.f32 %v1512, %v1520
        %v1523 = vadd.f32 %v1230, %v1521
        %v1524 = vadd.f32 %v1231, %v1522
        %v1525 = vpack.c.bf16 %v1521, %v1521
        %v1526 = vpack.c.bf16 %v1522, %v1522
        %1527 = vrot.lane.b32.xlu0 %v1401, 112
        %v1528 = vpop.permute.xlu0 %1527
        %v1530 = vsel %vm818, %v1525, 0
        %v1533 = vsel %vm945, %v1528, 0
        %1535 = vmatprep.subr.bf16.mxu0 0
        %1536 = vmatpush1.bf16.msra.mxu0 %v1533
        %1537 = vmatprep.subr.bf16.mxu0 0
        %1538 = vmatpush1.bf16.msra.mxu0 0
        %1539 = vmatprep.subr.bf16.mxu0 0
        %1540 = vmatpush1.bf16.msra.mxu0 0
        %1541 = vmatprep.subr.bf16.mxu0 0
        %1542 = vmatpush1.bf16.msra.mxu0 0
        %1543 = vmatprep.subr.bf16.mxu0 0
        %1544 = vmatpush1.bf16.msra.mxu0 0
        %1545 = vmatprep.subr.bf16.mxu0 0
        %1546 = vmatpush1.bf16.msra.mxu0 0
        %1547 = vmatprep.subr.bf16.mxu0 0
        %1548 = vmatpush1.bf16.msra.mxu0 0
        %1549 = vmatprep.subr.bf16.mxu0 0
        %1550 = vmatpush1.bf16.msra.mxu0 0
        %1551 = vmatprep.subr.bf16.mxu0 0
        %1552 = vmatpush1.bf16.msra.mxu0 0
        %1553 = vmatprep.subr.bf16.mxu0 0
        %1554 = vmatpush1.bf16.msra.mxu0 0
        %1555 = vmatprep.subr.bf16.mxu0 0
        %1556 = vmatpush1.bf16.msra.mxu0 0
        %1557 = vmatprep.subr.bf16.mxu0 0
        %1558 = vmatpush1.bf16.msra.mxu0 0
        %1559 = vmatprep.subr.bf16.mxu0 0
        %1560 = vmatpush1.bf16.msra.mxu0 0
        %1561 = vmatprep.subr.bf16.mxu0 0
        %1562 = vmatpush1.bf16.msra.mxu0 0
        %1563 = vmatprep.subr.bf16.mxu0 0
        %1564 = vmatpush1.bf16.msra.mxu0 0
        %1565 = vmatprep.subr.bf16.mxu0 0
        %1566 = vmatpush1.bf16.msra.mxu0 0
        %1567 = vmatprep.mubr.bf16.mxu0 0
        %1568 = vmatmul.mubr.bf16.gmra.mrb[0].mxu0 %v1530
        %v1569 = vpop.f32.mrb[0].mxu0
        %v1570 = vadd.f32 0.0, %v1569
        %v1571 = vpop.f32.mrb[0].mxu0
        %v1572 = vpop.f32.mrb[0].mxu0
        %v1573 = vpop.f32.mrb[0].mxu0
        %1574 = vdwg.mxu0
        %1575 = vrot.lane.b32.xlu0 %v1402, 112
        %v1576 = vpop.permute.xlu0 %1575
        %v1578 = vsel %vm818, %v1526, 0
        %v1581 = vsel %vm945, %v1576, 0
        %1583 = vmatprep.subr.bf16.mxu0 0
        %1584 = vmatpush1.bf16.msra.mxu0 %v1581
        %1585 = vmatprep.subr.bf16.mxu0 0
        %1586 = vmatpush1.bf16.msra.mxu0 0
        %1587 = vmatprep.subr.bf16.mxu0 0
        %1588 = vmatpush1.bf16.msra.mxu0 0
        %1589 = vmatprep.subr.bf16.mxu0 0
        %1590 = vmatpush1.bf16.msra.mxu0 0
        %1591 = vmatprep.subr.bf16.mxu0 0
        %1592 = vmatpush1.bf16.msra.mxu0 0
        %1593 = vmatprep.subr.bf16.mxu0 0
        %1594 = vmatpush1.bf16.msra.mxu0 0
        %1595 = vmatprep.subr.bf16.mxu0 0
        %1596 = vmatpush1.bf16.msra.mxu0 0
        %1597 = vmatprep.subr.bf16.mxu0 0
        %1598 = vmatpush1.bf16.msra.mxu0 0
        %1599 = vmatprep.subr.bf16.mxu0 0
        %1600 = vmatpush1.bf16.msra.mxu0 0
        %1601 = vmatprep.subr.bf16.mxu0 0
        %1602 = vmatpush1.bf16.msra.mxu0 0
        %1603 = vmatprep.subr.bf16.mxu0 0
        %1604 = vmatpush1.bf16.msra.mxu0 0
        %1605 = vmatprep.subr.bf16.mxu0 0
        %1606 = vmatpush1.bf16.msra.mxu0 0
        %1607 = vmatprep.subr.bf16.mxu0 0
        %1608 = vmatpush1.bf16.msra.mxu0 0
        %1609 = vmatprep.subr.bf16.mxu0 0
        %1610 = vmatpush1.bf16.msra.mxu0 0
        %1611 = vmatprep.subr.bf16.mxu0 0
        %1612 = vmatpush1.bf16.msra.mxu0 0
        %1613 = vmatprep.subr.bf16.mxu0 0
        %1614 = vmatpush1.bf16.msra.mxu0 0
        %1615 = vmatprep.mubr.bf16.mxu0 0
        %1616 = vmatmul.mubr.bf16.gmra.mrb[0].mxu0 %v1578
        %v1617 = vpop.f32.mrb[0].mxu0
        %v1618 = vadd.f32 0.0, %v1617
        %v1619 = vpop.f32.mrb[0].mxu0
        %v1620 = vpop.f32.mrb[0].mxu0
        %v1621 = vpop.f32.mrb[0].mxu0
        %1622 = vdwg.mxu0
        %v1623 = vpack.c.bf16 %v1618, %v1570
        %s1624 = scalar_lea.vmem %s646, 48
        %v1625 = vld [vmem:[%s1624] sm:$0xf]
        %v1626 = vld [vmem:[%s1624 + $0x4] sm:$0xf]
        %v1627 = vld [vmem:[%s1624 + $0x8] sm:$0xf]
        %v1628 = vld [vmem:[%s1624 + $0xc] sm:$0xf]
        %s1629 = scalar_lea.vmem %s650, 3
        %v1630 = vld [vmem:[%s1629] sm:$0x1]
        %v1632 = vlaneseq
        %v1633 = vshrl.u32 %v1632, 7
        %v1634 = vsub.s32 0, %v1633
        %v1635 = vrot.slane %v1630, %v1634
        %v1641 = vunpack.c.l.b16 %v1625
        %v1642 = vunpack.c.l.b16 %v1626
        %v1643 = vunpack.c.l.b16 %v1627
        %v1644 = vunpack.c.l.b16 %v1628
        %v1645 = vpack.c.b16 %v1642, %v1641
        %v1646 = vpack.c.b16 %v1644, %v1643
        %1649 = vmatprep.subr.bf16.mxu0 0
        %1650 = vmatpush1.bf16.msra.mxu0 %v1645
        %1651 = vmatprep.subr.bf16.mxu0 0
        %1652 = vmatpush1.bf16.msra.mxu0 %v1646
        %1653 = vmatprep.subr.bf16.mxu0 0
        %1654 = vmatpush1.bf16.msra.mxu0 0
        %1655 = vmatprep.subr.bf16.mxu0 0
        %1656 = vmatpush1.bf16.msra.mxu0 0
        %1657 = vmatprep.subr.bf16.mxu0 0
        %1658 = vmatpush1.bf16.msra.mxu0 0
        %1659 = vmatprep.subr.bf16.mxu0 0
        %1660 = vmatpush1.bf16.msra.mxu0 0
        %1661 = vmatprep.subr.bf16.mxu0 0
        %1662 = vmatpush1.bf16.msra.mxu0 0
        %1663 = vmatprep.subr.bf16.mxu0 0
        %1664 = vmatpush1.bf16.msra.mxu0 0
        %1665 = vmatprep.subr.bf16.mxu0 0
        %1666 = vmatpush1.bf16.msra.mxu0 0
        %1667 = vmatprep.subr.bf16.mxu0 0
        %1668 = vmatpush1.bf16.msra.mxu0 0
        %1669 = vmatprep.subr.bf16.mxu0 0
        %1670 = vmatpush1.bf16.msra.mxu0 0
        %1671 = vmatprep.subr.bf16.mxu0 0
        %1672 = vmatpush1.bf16.msra.mxu0 0
        %1673 = vmatprep.subr.bf16.mxu0 0
        %1674 = vmatpush1.bf16.msra.mxu0 0
        %1675 = vmatprep.subr.bf16.mxu0 0
        %1676 = vmatpush1.bf16.msra.mxu0 0
        %1677 = vmatprep.subr.bf16.mxu0 0
        %1678 = vmatpush1.bf16.msra.mxu0 0
        %1679 = vmatprep.subr.bf16.mxu0 0
        %1680 = vmatpush1.bf16.msra.mxu0 0
        %1681 = vmatprep.mubr.bf16.mxu0 0
        %1682 = vmatmul.mubr.bf16.gmra.mrb[0].mxu0 %v766
        %v1683 = vpop.f32.mrb[0].mxu0
        %v1684 = vadd.f32 %v1635, %v1683
        %v1685 = vpop.f32.mrb[0].mxu0
        %v1686 = vpop.f32.mrb[0].mxu0
        %v1687 = vadd.f32 %v1635, %v1686
        %v1688 = vpop.f32.mrb[0].mxu0
        %1689 = vdwg.mxu0
        %v1690 = vmul.f32 %v1684, 0.35355338
        %v1691 = vmul.f32 %v1687, 0.35355338
        %v1692 = vpack.c.bf16 %v1690, %v1690
        %v1693 = vpack.c.bf16 %v1691, %v1691
        %v1694 = vpack.c.bf16 %v1684, %v1684
        %v1695 = vpack.c.bf16 %v1687, %v1687
        %1697 = vrot.lane.b32.xlu0 %v1694, 120
        %v1698 = vpop.permute.xlu0 %1697
        %v1700 = vsel %vm818, %v1692, 0
        %v1703 = vsel %vm818, %v1698, 0
        %1705 = vmatprep.subr.bf16.mxu0 0
        %1706 = vmatpush1.bf16.xpose.msra.mxu0 %v1703
        %1707 = vmatprep.subr.bf16.mxu0 0
        %1708 = vmatpush1.bf16.xpose.msra.mxu0 0
        %1709 = vmatprep.subr.bf16.mxu0 0
        %1710 = vmatpush1.bf16.xpose.msra.mxu0 0
        %1711 = vmatprep.subr.bf16.mxu0 0
        %1712 = vmatpush1.bf16.xpose.msra.mxu0 0
        %1713 = vmatprep.subr.bf16.mxu0 0
        %1714 = vmatpush1.bf16.xpose.msra.mxu0 0
        %1715 = vmatprep.subr.bf16.mxu0 0
        %1716 = vmatpush1.bf16.xpose.msra.mxu0 0
        %1717 = vmatprep.subr.bf16.mxu0 0
        %1718 = vmatpush1.bf16.xpose.msra.mxu0 0
        %1719 = vmatprep.subr.bf16.mxu0 0
        %1720 = vmatpush1.bf16.xpose.msra.mxu0 0
        %1721 = vmatprep.subr.bf16.mxu0 0
        %1722 = vmatpush1.bf16.xpose.msra.mxu0 0
        %1723 = vmatprep.subr.bf16.mxu0 0
        %1724 = vmatpush1.bf16.xpose.msra.mxu0 0
        %1725 = vmatprep.subr.bf16.mxu0 0
        %1726 = vmatpush1.bf16.xpose.msra.mxu0 0
        %1727 = vmatprep.subr.bf16.mxu0 0
        %1728 = vmatpush1.bf16.xpose.msra.mxu0 0
        %1729 = vmatprep.subr.bf16.mxu0 0
        %1730 = vmatpush1.bf16.xpose.msra.mxu0 0
        %1731 = vmatprep.subr.bf16.mxu0 0
        %1732 = vmatpush1.bf16.xpose.msra.mxu0 0
        %1733 = vmatprep.subr.bf16.mxu0 0
        %1734 = vmatpush1.bf16.xpose.msra.mxu0 0
        %1735 = vmatprep.subr.bf16.mxu0 0
        %1736 = vmatpush1.bf16.xpose.msra.mxu0 0
        %1737 = vmatprep.mubr.bf16.mxu0 0
        %1738 = vmatmul.mubr.bf16.gmra.mrb[0].mxu0 %v1700
        %v1739 = vpop.f32.mrb[0].mxu0
        %v1740 = vadd.f32 0.0, %v1739
        %v1741 = vpop.f32.mrb[0].mxu0
        %v1742 = vpop.f32.mrb[0].mxu0
        %v1743 = vpop.f32.mrb[0].mxu0
        %1744 = vdwg.mxu0
        %1746 = vrot.lane.b32.xlu0 %v1695, 120
        %v1747 = vpop.permute.xlu0 %1746
        %v1749 = vsel %vm818, %v1693, 0
        %v1752 = vsel %vm818, %v1747, 0
        %1754 = vmatprep.subr.bf16.mxu0 0
        %1755 = vmatpush1.bf16.xpose.msra.mxu0 %v1752
        %1756 = vmatprep.subr.bf16.mxu0 0
        %1757 = vmatpush1.bf16.xpose.msra.mxu0 0
        %1758 = vmatprep.subr.bf16.mxu0 0
        %1759 = vmatpush1.bf16.xpose.msra.mxu0 0
        %1760 = vmatprep.subr.bf16.mxu0 0
        %1761 = vmatpush1.bf16.xpose.msra.mxu0 0
        %1762 = vmatprep.subr.bf16.mxu0 0
        %1763 = vmatpush1.bf16.xpose.msra.mxu0 0
        %1764 = vmatprep.subr.bf16.mxu0 0
        %1765 = vmatpush1.bf16.xpose.msra.mxu0 0
        %1766 = vmatprep.subr.bf16.mxu0 0
        %1767 = vmatpush1.bf16.xpose.msra.mxu0 0
        %1768 = vmatprep.subr.bf16.mxu0 0
        %1769 = vmatpush1.bf16.xpose.msra.mxu0 0
        %1770 = vmatprep.subr.bf16.mxu0 0
        %1771 = vmatpush1.bf16.xpose.msra.mxu0 0
        %1772 = vmatprep.subr.bf16.mxu0 0
        %1773 = vmatpush1.bf16.xpose.msra.mxu0 0
        %1774 = vmatprep.subr.bf16.mxu0 0
        %1775 = vmatpush1.bf16.xpose.msra.mxu0 0
        %1776 = vmatprep.subr.bf16.mxu0 0
        %1777 = vmatpush1.bf16.xpose.msra.mxu0 0
        %1778 = vmatprep.subr.bf16.mxu0 0
        %1779 = vmatpush1.bf16.xpose.msra.mxu0 0
        %1780 = vmatprep.subr.bf16.mxu0 0
        %1781 = vmatpush1.bf16.xpose.msra.mxu0 0
        %1782 = vmatprep.subr.bf16.mxu0 0
        %1783 = vmatpush1.bf16.xpose.msra.mxu0 0
        %1784 = vmatprep.subr.bf16.mxu0 0
        %1785 = vmatpush1.bf16.xpose.msra.mxu0 0
        %1786 = vmatprep.mubr.bf16.mxu0 0
        %1787 = vmatmul.mubr.bf16.gmra.mrb[0].mxu0 %v1749
        %v1788 = vpop.f32.mrb[0].mxu0
        %v1789 = vadd.f32 0.0, %v1788
        %v1790 = vpop.f32.mrb[0].mxu0
        %v1791 = vpop.f32.mrb[0].mxu0
        %v1792 = vpop.f32.mrb[0].mxu0
        %1793 = vdwg.mxu0
        %v1794 = vsel %vm818, %v1740, -inf
        %1795 = vmax.xlane.f32.xlu0 %v1794
        %v1796 = vpop.xlane.xlu0 %1795
        %v1797 = vsel %vm818, %v1789, -inf
        %1798 = vmax.xlane.f32.xlu0 %v1797
        %v1799 = vpop.xlane.xlu0 %1798
        %v1800 = vsub.f32 %v1740, %v1796
        %v1801 = vsub.f32 %v1789, %v1799
        %v1802 = vmul.f32 %v1800, 1.442695
        %v1803 = vpow.pop %v1802
        %v1804 = vmul.f32 %v1801, 1.442695
        %v1805 = vpow.pop %v1804
        %v1806 = vsel %vm818, %v1803, 0.0
        %1807 = vadd.xlane.f32.xlu0 %v1806
        %v1808 = vpop.xlane.xlu0 %1807
        %v1809 = vsel %vm818, %v1805, 0.0
        %1810 = vadd.xlane.f32.xlu0 %v1809
        %v1811 = vpop.xlane.xlu0 %1810
        %v1812 = vrcp.pop %v1808
        %v1813 = vrcp.pop %v1811
        %v1814 = vmul.f32 %v1803, %v1812
        %v1815 = vmul.f32 %v1805, %v1813
        %v1816 = vadd.f32 %v1523, %v1814
        %v1817 = vadd.f32 %v1524, %v1815
        %v1818 = vpack.c.bf16 %v1814, %v1814
        %v1819 = vpack.c.bf16 %v1815, %v1815
        %1820 = vrot.lane.b32.xlu0 %v1694, 112
        %v1821 = vpop.permute.xlu0 %1820
        %v1823 = vsel %vm818, %v1818, 0
        %v1826 = vsel %vm945, %v1821, 0
        %1828 = vmatprep.subr.bf16.mxu0 0
        %1829 = vmatpush1.bf16.msra.mxu0 %v1826
        %1830 = vmatprep.subr.bf16.mxu0 0
        %1831 = vmatpush1.bf16.msra.mxu0 0
        %1832 = vmatprep.subr.bf16.mxu0 0
        %1833 = vmatpush1.bf16.msra.mxu0 0
        %1834 = vmatprep.subr.bf16.mxu0 0
        %1835 = vmatpush1.bf16.msra.mxu0 0
        %1836 = vmatprep.subr.bf16.mxu0 0
        %1837 = vmatpush1.bf16.msra.mxu0 0
        %1838 = vmatprep.subr.bf16.mxu0 0
        %1839 = vmatpush1.bf16.msra.mxu0 0
        %1840 = vmatprep.subr.bf16.mxu0 0
        %1841 = vmatpush1.bf16.msra.mxu0 0
        %1842 = vmatprep.subr.bf16.mxu0 0
        %1843 = vmatpush1.bf16.msra.mxu0 0
        %1844 = vmatprep.subr.bf16.mxu0 0
        %1845 = vmatpush1.bf16.msra.mxu0 0
        %1846 = vmatprep.subr.bf16.mxu0 0
        %1847 = vmatpush1.bf16.msra.mxu0 0
        %1848 = vmatprep.subr.bf16.mxu0 0
        %1849 = vmatpush1.bf16.msra.mxu0 0
        %1850 = vmatprep.subr.bf16.mxu0 0
        %1851 = vmatpush1.bf16.msra.mxu0 0
        %1852 = vmatprep.subr.bf16.mxu0 0
        %1853 = vmatpush1.bf16.msra.mxu0 0
        %1854 = vmatprep.subr.bf16.mxu0 0
        %1855 = vmatpush1.bf16.msra.mxu0 0
        %1856 = vmatprep.subr.bf16.mxu0 0
        %1857 = vmatpush1.bf16.msra.mxu0 0
        %1858 = vmatprep.subr.bf16.mxu0 0
        %1859 = vmatpush1.bf16.msra.mxu0 0
        %1860 = vmatprep.mubr.bf16.mxu0 0
        %1861 = vmatmul.mubr.bf16.gmra.mrb[0].mxu0 %v1823
        %v1862 = vpop.f32.mrb[0].mxu0
        %v1863 = vadd.f32 0.0, %v1862
        %v1864 = vpop.f32.mrb[0].mxu0
        %v1865 = vpop.f32.mrb[0].mxu0
        %v1866 = vpop.f32.mrb[0].mxu0
        %1867 = vdwg.mxu0
        %1868 = vrot.lane.b32.xlu0 %v1695, 112
        %v1869 = vpop.permute.xlu0 %1868
        %v1871 = vsel %vm818, %v1819, 0
        %v1874 = vsel %vm945, %v1869, 0
        %1876 = vmatprep.subr.bf16.mxu0 0
        %1877 = vmatpush1.bf16.msra.mxu0 %v1874
        %1878 = vmatprep.subr.bf16.mxu0 0
        %1879 = vmatpush1.bf16.msra.mxu0 0
        %1880 = vmatprep.subr.bf16.mxu0 0
        %1881 = vmatpush1.bf16.msra.mxu0 0
        %1882 = vmatprep.subr.bf16.mxu0 0
        %1883 = vmatpush1.bf16.msra.mxu0 0
        %1884 = vmatprep.subr.bf16.mxu0 0
        %1885 = vmatpush1.bf16.msra.mxu0 0
        %1886 = vmatprep.subr.bf16.mxu0 0
        %1887 = vmatpush1.bf16.msra.mxu0 0
        %1888 = vmatprep.subr.bf16.mxu0 0
        %1889 = vmatpush1.bf16.msra.mxu0 0
        %1890 = vmatprep.subr.bf16.mxu0 0
        %1891 = vmatpush1.bf16.msra.mxu0 0
        %1892 = vmatprep.subr.bf16.mxu0 0
        %1893 = vmatpush1.bf16.msra.mxu0 0
        %1894 = vmatprep.subr.bf16.mxu0 0
        %1895 = vmatpush1.bf16.msra.mxu0 0
        %1896 = vmatprep.subr.bf16.mxu0 0
        %1897 = vmatpush1.bf16.msra.mxu0 0
        %1898 = vmatprep.subr.bf16.mxu0 0
        %1899 = vmatpush1.bf16.msra.mxu0 0
        %1900 = vmatprep.subr.bf16.mxu0 0
        %1901 = vmatpush1.bf16.msra.mxu0 0
        %1902 = vmatprep.subr.bf16.mxu0 0
        %1903 = vmatpush1.bf16.msra.mxu0 0
        %1904 = vmatprep.subr.bf16.mxu0 0
        %1905 = vmatpush1.bf16.msra.mxu0 0
        %1906 = vmatprep.subr.bf16.mxu0 0
        %1907 = vmatpush1.bf16.msra.mxu0 0
        %1908 = vmatprep.mubr.bf16.mxu0 0
        %1909 = vmatmul.mubr.bf16.gmra.mrb[0].mxu0 %v1871
        %v1910 = vpop.f32.mrb[0].mxu0
        %v1911 = vadd.f32 0.0, %v1910
        %v1912 = vpop.f32.mrb[0].mxu0
        %v1913 = vpop.f32.mrb[0].mxu0
        %v1914 = vpop.f32.mrb[0].mxu0
        %1915 = vdwg.mxu0
        %v1916 = vpack.c.bf16 %v1911, %v1863
        %1918 = vrot.lane.b32.xlu0 %v1330, 8
        %v1919 = vpop.permute.xlu0 %1918
        %1921 = vrot.lane.b32.xlu0 %v1623, 16
        %v1922 = vpop.permute.xlu0 %1921
        %1924 = vrot.lane.b32.xlu0 %v1916, 24
        %v1925 = vpop.permute.xlu0 %1924
        %v1928 = vsel %vm818, %v1037, %v1919
        %vm1929 = vcmask 130048
        %v1931 = vsel %vm1929, %v1928, %v1922
        %vm1932 = vcmask 195584
        %v1934 = vsel %vm1932, %v1931, %v1925
        %v1935 = vld [vmem:[%s655] sm:$0xf]
        %v1936 = vld [vmem:[%s655 + $0x4] sm:$0xf]
        %v1937 = vld [vmem:[%s655 + $0x8] sm:$0xf]
        %v1938 = vld [vmem:[%s655 + $0xc] sm:$0xf]
        %v1943 = vunpack.c.l.b16 %v1935
        %v1944 = vunpack.c.l.b16 %v1936
        %v1945 = vunpack.c.l.b16 %v1937
        %v1946 = vunpack.c.l.b16 %v1938
        %v1947 = vpack.c.b16 %v1944, %v1943
        %v1948 = vpack.c.b16 %v1946, %v1945
        %v1951 = vsel %vm697, %v1934, 0
        %1953 = vmatprep.subr.bf16.mxu0 0
        %1954 = vmatpush1.bf16.msra.mxu0 %v1947
        %1955 = vmatprep.subr.bf16.mxu0 0
        %1956 = vmatpush1.bf16.msra.mxu0 %v1948
        %1957 = vmatprep.subr.bf16.mxu0 0
        %1958 = vmatpush1.bf16.msra.mxu0 0
        %1959 = vmatprep.subr.bf16.mxu0 0
        %1960 = vmatpush1.bf16.msra.mxu0 0
        %1961 = vmatprep.subr.bf16.mxu0 0
        %1962 = vmatpush1.bf16.msra.mxu0 0
        %1963 = vmatprep.subr.bf16.mxu0 0
        %1964 = vmatpush1.bf16.msra.mxu0 0
        %1965 = vmatprep.subr.bf16.mxu0 0
        %1966 = vmatpush1.bf16.msra.mxu0 0
        %1967 = vmatprep.subr.bf16.mxu0 0
        %1968 = vmatpush1.bf16.msra.mxu0 0
        %1969 = vmatprep.subr.bf16.mxu0 0
        %1970 = vmatpush1.bf16.msra.mxu0 0
        %1971 = vmatprep.subr.bf16.mxu0 0
        %1972 = vmatpush1.bf16.msra.mxu0 0
        %1973 = vmatprep.subr.bf16.mxu0 0
        %1974 = vmatpush1.bf16.msra.mxu0 0
        %1975 = vmatprep.subr.bf16.mxu0 0
        %1976 = vmatpush1.bf16.msra.mxu0 0
        %1977 = vmatprep.subr.bf16.mxu0 0
        %1978 = vmatpush1.bf16.msra.mxu0 0
        %1979 = vmatprep.subr.bf16.mxu0 0
        %1980 = vmatpush1.bf16.msra.mxu0 0
        %1981 = vmatprep.subr.bf16.mxu0 0
        %1982 = vmatpush1.bf16.msra.mxu0 0
        %1983 = vmatprep.subr.bf16.mxu0 0
        %1984 = vmatpush1.bf16.msra.mxu0 0
        %1985 = vmatprep.mubr.bf16.mxu0 0
        %1986 = vmatmul.mubr.bf16.gmra.mrb[0].mxu0 %v1951
        %v1987 = vpop.f32.mrb[0].mxu0
        %v1988 = vadd.f32 0.0, %v1987
        %v1989 = vpop.f32.mrb[0].mxu0
        %v1990 = vpop.f32.mrb[0].mxu0
        %v1991 = vadd.f32 0.0, %v1990
        %v1992 = vpop.f32.mrb[0].mxu0
        %1993 = vdwg.mxu0
        %v1994 = vadd.f32 %v693, %v1988
        %v1995 = vadd.f32 %v694, %v1991
        %v1996 = vld [vmem:[%s658] sm:$0x1]
        %v1998 = vlaneseq
        %v1999 = vshrl.u32 %v1998, 7
        %v2000 = vsub.s32 0, %v1999
        %v2001 = vrot.slane %v1996, %v2000
        %v2003 = vadd.f32 %v1994, %v2001
        %v2004 = vadd.f32 %v1995, %v2001
        %v2005 = vmul.f32 %v1816, 0.25
        %v2006 = vmul.f32 %v1817, 0.25
        %v2007 = vpack.c.bf16 %v2005, %v2005
        %v2008 = vpack.c.bf16 %v2006, %v2006
        %v2011 = vsel %vm818, %v2007, 0
        %v2014 = vsel %vm818, %v2008, 0
        %2016 = vst [vmem:[%s629] sm:$0xf] %v2011
        %2017 = vst [vmem:[%s629 + $0x4] sm:$0xf] %v2014
        %v2018 = vld [vmem:[%s661] sm:$0x1]
        %v2019 = vld [vmem:[%s664] sm:$0x1]
        %v2020 = vsel %vm697, %v2003, 0.0
        %2021 = vadd.xlane.f32.xlu0 %v2020
        %v2022 = vpop.xlane.xlu0 %2021
        %v2023 = vsel %vm697, %v2004, 0.0
        %2024 = vadd.xlane.f32.xlu0 %v2023
        %v2025 = vpop.xlane.xlu0 %2024
        %v2026 = vmul.f32 %v2022, %v704
        %v2027 = vmul.f32 %v2025, %v704
        %v2028 = vsub.f32 %v2003, %v2026
        %v2029 = vsub.f32 %v2004, %v2027
        %v2030 = vmul.f32 %v2028, %v2028
        %v2031 = vmul.f32 %v2029, %v2029
        %v2032 = vsel %vm697, %v2030, 0.0
        %2033 = vadd.xlane.f32.xlu0 %v2032
        %v2034 = vpop.xlane.xlu0 %2033
        %v2035 = vsel %vm697, %v2031, 0.0
        %2036 = vadd.xlane.f32.xlu0 %v2035
        %v2037 = vpop.xlane.xlu0 %2036
        %v2038 = vmul.f32 %v2034, %v704
        %v2039 = vmul.f32 %v2037, %v704
        %v2040 = vadd.f32 %v2038, 1e-05
        %v2041 = vadd.f32 %v2039, 1e-05
        %v2042 = vrsqrt.pop %v2040
        %v2043 = vrsqrt.pop %v2041
        %v2044 = vmul.f32 %v2028, %v2042
        %v2045 = vmul.f32 %v2029, %v2043
        %v2047 = vlaneseq
        %v2048 = vshrl.u32 %v2047, 7
        %v2049 = vsub.s32 0, %v2048
        %v2050 = vrot.slane %v2018, %v2049
        %v2052 = vmul.f32 %v2044, %v2050
        %v2053 = vmul.f32 %v2045, %v2050
        %v2055 = vlaneseq
        %v2056 = vshrl.u32 %v2055, 7
        %v2057 = vsub.s32 0, %v2056
        %v2058 = vrot.slane %v2019, %v2057
        %v2060 = vadd.f32 %v2052, %v2058
        %v2061 = vadd.f32 %v2053, %v2058
        %v2062 = vpack.c.bf16 %v2061, %v2060
        %v2063 = vld [vmem:[%s669] sm:$0xf]
        %v2064 = vld [vmem:[%s669 + $0x4] sm:$0xf]
        %v2065 = vld [vmem:[%s669 + $0x8] sm:$0xf]
        %v2066 = vld [vmem:[%s669 + $0xc] sm:$0xf]
        %v2067 = vld [vmem:[%s672] sm:$0x1]
        %v2069 = vlaneseq
        %v2070 = vshrl.u32 %v2069, 7
        %v2071 = vsub.s32 0, %v2070
        %v2072 = vrot.slane %v2067, %v2071
        %v2078 = vunpack.c.l.b16 %v2063
        %v2079 = vunpack.c.l.b16 %v2064
        %v2080 = vunpack.c.l.b16 %v2065
        %v2081 = vunpack.c.l.b16 %v2066
        %v2082 = vpack.c.b16 %v2079, %v2078
        %v2083 = vpack.c.b16 %v2081, %v2080
        %v2087 = vsel %vm697, %v2062, 0
        %2089 = vmatprep.subr.bf16.mxu0 0
        %2090 = vmatpush1.bf16.msra.mxu0 %v2082
        %2091 = vmatprep.subr.bf16.mxu0 0
        %2092 = vmatpush1.bf16.msra.mxu0 %v2083
        %2093 = vmatprep.subr.bf16.mxu0 0
        %2094 = vmatpush1.bf16.msra.mxu0 0
        %2095 = vmatprep.subr.bf16.mxu0 0
        %2096 = vmatpush1.bf16.msra.mxu0 0
        %2097 = vmatprep.subr.bf16.mxu0 0
        %2098 = vmatpush1.bf16.msra.mxu0 0
        %2099 = vmatprep.subr.bf16.mxu0 0
        %2100 = vmatpush1.bf16.msra.mxu0 0
        %2101 = vmatprep.subr.bf16.mxu0 0
        %2102 = vmatpush1.bf16.msra.mxu0 0
        %2103 = vmatprep.subr.bf16.mxu0 0
        %2104 = vmatpush1.bf16.msra.mxu0 0
        %2105 = vmatprep.subr.bf16.mxu0 0
        %2106 = vmatpush1.bf16.msra.mxu0 0
        %2107 = vmatprep.subr.bf16.mxu0 0
        %2108 = vmatpush1.bf16.msra.mxu0 0
        %2109 = vmatprep.subr.bf16.mxu0 0
        %2110 = vmatpush1.bf16.msra.mxu0 0
        %2111 = vmatprep.subr.bf16.mxu0 0
        %2112 = vmatpush1.bf16.msra.mxu0 0
        %2113 = vmatprep.subr.bf16.mxu0 0
        %2114 = vmatpush1.bf16.msra.mxu0 0
        %2115 = vmatprep.subr.bf16.mxu0 0
        %2116 = vmatpush1.bf16.msra.mxu0 0
        %2117 = vmatprep.subr.bf16.mxu0 0
        %2118 = vmatpush1.bf16.msra.mxu0 0
        %2119 = vmatprep.subr.bf16.mxu0 0
        %2120 = vmatpush1.bf16.msra.mxu0 0
        %2121 = vmatprep.mubr.bf16.mxu0 0
        %2122 = vmatmul.mubr.bf16.gmra.mrb[0].mxu0 %v2087
        %v2123 = vpop.f32.mrb[0].mxu0
        %v2124 = vadd.f32 %v2072, %v2123
        %v2125 = vpop.f32.mrb[0].mxu0
        %v2126 = vpop.f32.mrb[0].mxu0
        %v2127 = vadd.f32 %v2072, %v2126
        %v2128 = vpop.f32.mrb[0].mxu0
        %2129 = vdwg.mxu0
        %v2130 = vmul.f32 %v2124, 0.5
        %v2131 = vmul.f32 %v2127, 0.5
        %v2132 = vmul.f32 %v2124, 0.044715
        %v2133 = vmul.f32 %v2127, 0.044715
        %v2134 = vmul.f32 %v2132, %v2124
        %v2135 = vmul.f32 %v2133, %v2127
        %v2136 = vmul.f32 %v2134, %v2124
        %v2137 = vmul.f32 %v2135, %v2127
        %v2138 = vadd.f32 %v2124, %v2136
        %v2139 = vadd.f32 %v2127, %v2137
        %v2140 = vmul.f32 %v2138, 0.7978846
        %v2141 = vmul.f32 %v2139, 0.7978846
        %v2142 = vtanh.pop %v2140
        %v2143 = vtanh.pop %v2141
        %v2144 = vadd.f32 %v2142, 1.0
        %v2145 = vadd.f32 %v2143, 1.0
        %v2146 = vmul.f32 %v2130, %v2144
        %v2147 = vmul.f32 %v2131, %v2145
        %v2148 = vpack.c.bf16 %v2147, %v2146
        %v2149 = vld [vmem:[%s677] sm:$0xf]
        %v2150 = vld [vmem:[%s677 + $0x4] sm:$0xf]
        %v2151 = vld [vmem:[%s677 + $0x8] sm:$0xf]
        %v2152 = vld [vmem:[%s677 + $0xc] sm:$0xf]
        %v2153 = vld [vmem:[%s677 + $0x10] sm:$0xf]
        %v2154 = vld [vmem:[%s677 + $0x14] sm:$0xf]
        %v2155 = vld [vmem:[%s677 + $0x18] sm:$0xf]
        %v2156 = vld [vmem:[%s677 + $0x1c] sm:$0xf]
        %v2165 = vunpack.c.l.b16 %v2149
        %v2166 = vunpack.c.l.b16 %v2150
        %v2167 = vunpack.c.l.b16 %v2151
        %v2168 = vunpack.c.l.b16 %v2152
        %v2169 = vunpack.c.l.b16 %v2153
        %v2170 = vunpack.c.l.b16 %v2154
        %v2171 = vunpack.c.l.b16 %v2155
        %v2172 = vunpack.c.l.b16 %v2156
        %v2173 = vpack.c.b16 %v2166, %v2165
        %v2174 = vpack.c.b16 %v2168, %v2167
        %v2175 = vpack.c.b16 %v2170, %v2169
        %v2176 = vpack.c.b16 %v2172, %v2171
        %vm2181 = vcmask 523264
        %v2183 = vsel %vm2181, %v2148, 0
        %2185 = vmatprep.subr.bf16.mxu0 0
        %2186 = vmatpush1.bf16.msra.mxu0 %v2173
        %2187 = vmatprep.subr.bf16.mxu0 0
        %2188 = vmatpush1.bf16.msra.mxu0 %v2174
        %2189 = vmatprep.subr.bf16.mxu0 0
        %2190 = vmatpush1.bf16.msra.mxu0 %v2175
        %2191 = vmatprep.subr.bf16.mxu0 0
        %2192 = vmatpush1.bf16.msra.mxu0 %v2176
        %2193 = vmatprep.subr.bf16.mxu0 0
        %2194 = vmatpush1.bf16.msra.mxu0 0
        %2195 = vmatprep.subr.bf16.mxu0 0
        %2196 = vmatpush1.bf16.msra.mxu0 0
        %2197 = vmatprep.subr.bf16.mxu0 0
        %2198 = vmatpush1.bf16.msra.mxu0 0
        %2199 = vmatprep.subr.bf16.mxu0 0
        %2200 = vmatpush1.bf16.msra.mxu0 0
        %2201 = vmatprep.subr.bf16.mxu0 0
        %2202 = vmatpush1.bf16.msra.mxu0 0
        %2203 = vmatprep.subr.bf16.mxu0 0
        %2204 = vmatpush1.bf16.msra.mxu0 0
        %2205 = vmatprep.subr.bf16.mxu0 0
        %2206 = vmatpush1.bf16.msra.mxu0 0
        %2207 = vmatprep.subr.bf16.mxu0 0
        %2208 = vmatpush1.bf16.msra.mxu0 0
        %2209 = vmatprep.subr.bf16.mxu0 0
        %2210 = vmatpush1.bf16.msra.mxu0 0
        %2211 = vmatprep.subr.bf16.mxu0 0
        %2212 = vmatpush1.bf16.msra.mxu0 0
        %2213 = vmatprep.subr.bf16.mxu0 0
        %2214 = vmatpush1.bf16.msra.mxu0 0
        %2215 = vmatprep.subr.bf16.mxu0 0
        %2216 = vmatpush1.bf16.msra.mxu0 0
        %2217 = vmatprep.mubr.bf16.mxu0 0
        %2218 = vmatmul.mubr.bf16.gmra.mrb[0].mxu0 %v2183
        %v2219 = vpop.f32.mrb[0].mxu0
        %v2220 = vadd.f32 0.0, %v2219
        %v2221 = vpop.f32.mrb[0].mxu0
        %v2222 = vpop.f32.mrb[0].mxu0
        %v2223 = vadd.f32 0.0, %v2222
        %v2224 = vpop.f32.mrb[0].mxu0
        %2225 = vdwg.mxu0
        %v2226 = vadd.f32 %v2003, %v2220
        %v2227 = vadd.f32 %v2004, %v2223
        %v2228 = vld [vmem:[%s680] sm:$0x1]
        %v2230 = vlaneseq
        %v2231 = vshrl.u32 %v2230, 7
        %v2232 = vsub.s32 0, %v2231
        %v2233 = vrot.slane %v2228, %v2232
        %v2235 = vadd.f32 %v2226, %v2233
        %v2236 = vadd.f32 %v2227, %v2233
        %2237 = vst.msk [vmem:[#allocation2] sm:$0xff] %vm697, %v2235
        %2238 = vst.msk [vmem:[#allocation2 + $0x8] sm:$0xff] %vm697, %v2236
        %p2239 = scmp.eq.s32.totalorder %s35, 1
        // Predicated region
        $region77: #{tpu_custom_call.1} parent=71 // pred_check
          %p2240 = pneg %p2239
        $region78: #{tpu_custom_call.1} parent=71 // pred_check_branch
          %2242 = sbr.rel (%p2240) target = $region80
        $region79: #{tpu_custom_call.1} parent=71 // pred_region
          %v2243 = vsel %vm697, %v2235, 0.0
          %v2244 = vsel %vm697, %v2236, 0.0
          %2245 = vst [vmem:[#allocation3] sm:$0xff] %v2243
          %2246 = vst [vmem:[#allocation3 + $0x8] sm:$0xff] %v2244
        $region80: #{tpu_custom_call.1} parent=71 // pred_fallthru
          _
        %s2247 = sand.u32 %s416, 1
        %s2248 = scalar_lea.sflag [#allocation6], %s2247
        %s2249 = sand.u32 %s416, 1
        %s2250 = smul.addr %s2249, 8
        %s2251 = scalar_lea.vmem [#allocation5], %s2250
        // Predicated region
        $region81: #{tpu_custom_call.1} parent=71 // pred_check
          %p2252 = pneg %p398
        $region82: #{tpu_custom_call.1} parent=71 // pred_check_branch
          %2254 = sbr.rel (%p2252) target = $region84
        $region83: #{tpu_custom_call.1} parent=71 // pred_region
          %s2255 = smul.u32 2, %s34
          %s2257 = ssub.s32 256, 256
          %2258 = vsyncadd [#allocation4], %s2257
          %s2259 = smul.addr %s2255, 128
          %s2260 = scalar_lea.hbm %s13, %s2259
          %s2261 = sshll.u32 [#allocation3], 4
          %s2262 = int_to_ptr.vmem [resolvable:$true] %s2261
          %2267 = dma.vmem_to_hbm [thread:$0]  %s2262, 256, %s2260, [#allocation4], 128, 128, 8
        $region84: #{tpu_custom_call.1} parent=71 // pred_fallthru
          _
        // Predicated region
        $region85: #{tpu_custom_call.1} parent=71 // pred_check
          %p2268 = pneg %p426
        $region86: #{tpu_custom_call.1} parent=71 // pred_check_branch
          %2270 = sbr.rel (%p2268) target = $region88
        $region87: #{tpu_custom_call.1} parent=71 // pred_region
          %s2271 = smul.u32 2, %s34
          %s2273 = ssub.s32 128, 128
          %2274 = vsyncadd %s2248, %s2273
          %s2275 = smul.addr %s35, 2
          %s2276 = sadd.s32 %s2271, %s2275
          %s2277 = smul.addr %s2276, 64
          %s2278 = scalar_lea.hbm %s14, %s2277
          %s2279 = sshll.u32 %s2251, 4
          %s2280 = int_to_ptr.vmem [resolvable:$true] %s2279
          %2285 = dma.vmem_to_hbm [thread:$0]  %s2280, 128, %s2278, %s2248, 64, 64, 4
        $region88: #{tpu_custom_call.1} parent=71 // pred_fallthru
          _
        // Predicated region
        $region89: #{tpu_custom_call.1} parent=71 // pred_check
          %p2286 = pneg %p398
        $region90: #{tpu_custom_call.1} parent=71 // pred_check_branch
          %2288 = sbr.rel (%p2286) target = $region92
        $region91: #{tpu_custom_call.1} parent=71 // pred_region
          %2289 = dma.done [#allocation4], 256
        $region92: #{tpu_custom_call.1} parent=71 // pred_fallthru
          _
      $region72: #{tpu_custom_call.1} parent=5 // pred_fallthru
        _
      %p2290 = scmp.le.s32.totalorder 2, %s25
      // Predicated region
      $region93: #{tpu_custom_call.1} parent=5 // pred_check
        %p2291 = pneg %p2290
      $region94: #{tpu_custom_call.1} parent=5 // pred_check_branch
        %2293 = sbr.rel (%p2291) target = $region96
      $region95: #{tpu_custom_call.1} parent=5 // pred_region
        %s2294 = ssub.s32 %s25, 2
        // Predicated region
        $region97: #{tpu_custom_call.1} parent=95 // pred_check
          %p2295 = pneg %p432
        $region98: #{tpu_custom_call.1} parent=95 // pred_check_branch
          %2297 = sbr.rel (%p2295) target = $region100
        $region99: #{tpu_custom_call.1} parent=95 // pred_region
          %s2298 = sand.u32 %s417, 1
          %s2299 = scalar_lea.sflag [#allocation6], %s2298
          %s2300 = sand.u32 %s417, 1
          %s2301 = smul.addr %s2300, 8
          %s2302 = scalar_lea.vmem [#allocation5], %s2301
          %2303 = dma.done %s2299, 128
        $region100: #{tpu_custom_call.1} parent=95 // pred_fallthru
          _
      $region96: #{tpu_custom_call.1} parent=5 // pred_fallthru
        _
    $region6: #{tpu_custom_call.1} parent=1 // loop_footer
      %s29 = sadd.s32 1, %s25
    $region7: #{tpu_custom_call.1} parent=1 // loop_footer_branch
      %24 = sbr.rel target = $region3
    $region8: #{tpu_custom_call.1} parent=1 // loop_exit
      _
    %2304 = vsyncpa [#allocation4], 1
    %s2305 = scalar_lea.sflag [#allocation4], 1
    %2306 = vsyncpa %s2305, 1
    %2307 = vsyncpa [#allocation6], 1
    %s2308 = scalar_lea.sflag [#allocation6], 1
    %2309 = vsyncpa %s2308, 1

</llo_original>
